<compile_context>
chip_gen: v5e
topology: v5e:2x2
jax: 0.10.0
libtpu: 0.0.40
codegen_flags: <defaults>
</compile_context>

<pallas_src>
import jax
import jax.numpy as jnp
from jax import lax
from jax.experimental import pallas as pl
from jax.experimental.pallas import tpu as pltpu
import numpy as np


# ---------------------------------------------------------------------------
# Fused RDB kernel factory.
# Layout inside the kernel:
#   feat scratch : (C_total, Hp*Wp)  -- zero-padded image, channels on sublanes,
#                                       flattened padded spatial on lanes.
#   col  scratch : (9*Cpad, Q)       -- im2col staging, tap t occupies rows
#                                       [t*Cpad, t*Cpad + Cin_layer).
# Tap (ky, kx) of a 3x3 conv is the lane window feat[:, d : d+Q], d = ky*Wp+kx.
# Q = (H-1)*Wp + W covers every interior output position; columns with
# (q % Wp) >= W are garbage and are masked to zero before being written back
# into the padding columns of the slab (which must stay zero).
# ---------------------------------------------------------------------------
def _make_rdb_kernel(H, W, C_in, G, L, Cpad):
    Hp, Wp = H + 2, W + 2
    Q = (H - 1) * Wp + W          # compute window for the 3x3 taps
    Qout = H * Wp                 # output window (cropped to (H, W) in wrapper)
    C_total = C_in + L * G

    def kernel(*refs):
        x_ref = refs[0]                                   # (1, C_in, Hp*Wp)
        mask_ref = refs[1]                                # (1, Q)
        w_refs = [refs[2 + 2 * k] for k in range(L)]      # (G, 9*Cpad)
        b_refs = [refs[3 + 2 * k] for k in range(L)]      # (G, 1)
        w1_ref = refs[2 + 2 * L]                          # (C_in, C_total)
        b1_ref = refs[3 + 2 * L]                          # (C_in, 1)
        o_ref = refs[4 + 2 * L]                           # (1, C_in, Qout)
        feat = refs[5 + 2 * L]                            # (C_total, Hp*Wp)
        col = refs[6 + 2 * L]                             # (9*Cpad, Q)

        # ---- init the VMEM-resident dense feature slab --------------------
        feat[C_in:C_total, :] = jnp.zeros((C_total - C_in, Hp * Wp), jnp.float32)
        feat[0:C_in, :] = x_ref[0]                        # padded input channels
        col[...] = jnp.zeros_like(col)                    # tap-padding rows = 0

        mask = mask_ref[...]                              # (1, Q)

        # ---- dense layers: 3x3 conv + bias + ReLU; "concat" = channel slice
        c = C_in
        for k in range(L):
            for t in range(9):                            # build im2col slab
                ky, kx = t // 3, t % 3
                d = ky * Wp + kx
                col[t * Cpad:t * Cpad + c, :] = feat[0:c, d:d + Q]
            y = jnp.dot(w_refs[k][...], col[...],
                        preferred_element_type=jnp.float32)      # (G, Q)
            y = jnp.maximum(y + b_refs[k][...], 0.0) * mask       # ReLU + mask
            feat[c:c + G, Wp + 1:Wp + 1 + Q] = y          # write into interior
            c += G

        # ---- 1x1 conv + bias + residual add (lane-dense output) -----------
        slab = feat[:, Wp + 1:Wp + 1 + Qout]              # (C_total, Qout)
        res = feat[0:C_in, Wp + 1:Wp + 1 + Qout]          # padded x = residual
        y1 = jnp.dot(w1_ref[...], slab, preferred_element_type=jnp.float32)
        o_ref[0] = (y1 + b1_ref[...] + res).astype(o_ref.dtype)

    return kernel


# ---------------------------------------------------------------------------
# RDB forward (Pallas path).  Input/Output: NCHW float32, like the torch module.
# Only glue left in XLA: one spatial zero-pad of x and one crop of the output.
# ---------------------------------------------------------------------------
def rdb_forward_pallas(x_nchw, params):
    N, C_in, H, W = x_nchw.shape
    L = len(params["dense"])
    G = params["dense"][0][0].shape[0]
    C_total = C_in + L * G
    c_last = C_in + (L - 1) * G
    Cpad = ((c_last + 7) // 8) * 8            # 8-aligned tap stride in im2col
    Hp, Wp = H + 2, W + 2
    Q = (H - 1) * Wp + W
    Qout = H * Wp

    # Single spatial zero-pad of the input (replaces per-layer jnp.pad).
    x_pad = jnp.pad(x_nchw, ((0, 0), (0, 0), (1, 1), (1, 1)))
    x_pad = x_pad.reshape(N, C_in, Hp * Wp)

    # Interior-column mask over the tap compute window.
    mask = ((jnp.arange(Q, dtype=jnp.int32) % Wp) < W).astype(x_nchw.dtype)
    mask = mask.reshape(1, Q)

    args = [x_pad, mask]
    in_specs = [
        pl.BlockSpec((1, C_in, Hp * Wp), lambda n: (n, 0, 0)),
        pl.BlockSpec((1, Q), lambda n: (0, 0)),
    ]
    # Dense-layer weights: OIHW -> (G, ky, kx, i), pad i to Cpad, flatten to
    # (G, 9*Cpad) so column (ky*3+kx)*Cpad + i matches the im2col row layout.
    for (w_oihw, b) in params["dense"]:
        c = w_oihw.shape[1]
        w = jnp.transpose(w_oihw, (0, 2, 3, 1))           # (G, 3, 3, c)
        w = jnp.pad(w, ((0, 0), (0, 0), (0, 0), (0, Cpad - c)))
        args += [w.reshape(G, 9 * Cpad), b.reshape(G, 1)]
        in_specs += [pl.BlockSpec((G, 9 * Cpad), lambda n: (0, 0)),
                     pl.BlockSpec((G, 1), lambda n: (0, 0))]
    w1_oihw, b1 = params["conv1x1"]
    args += [w1_oihw[:, :, 0, 0], b1.reshape(C_in, 1)]
    in_specs += [pl.BlockSpec((C_in, C_total), lambda n: (0, 0)),
                 pl.BlockSpec((C_in, 1), lambda n: (0, 0))]

    kernel = _make_rdb_kernel(H, W, C_in, G, L, Cpad)

    out = pl.pallas_call(
        kernel,
        out_shape=jax.ShapeDtypeStruct((N, C_in, Qout), x_nchw.dtype),
        grid=(N,),
        in_specs=in_specs,
        out_specs=pl.BlockSpec((1, C_in, Qout), lambda n: (n, 0, 0)),
        scratch_shapes=[
            pltpu.VMEM((C_total, Hp * Wp), jnp.float32),  # dense feature slab
            pltpu.VMEM((9 * Cpad, Q), jnp.float32),       # im2col staging
        ],
        compiler_params=pltpu.CompilerParams(
            dimension_semantics=("parallel",),            # batch axis -> megacore
            vmem_limit_bytes=48 * 1024 * 1024),           # safe on v5e/v6e/v7x
    )(*args)

    # Kernel output rows are padded-grid rows (length Wp); drop the 2 padding
    # columns per row to recover NCHW.  (Tiny XLA slice; keeps kernel stores
    # lane-dense.)
    return out.reshape(N, C_in, H, Wp)[:, :, :, :W]


# ---------------------------------------------------------------------------
# Pure-JAX reference (mirrors the PyTorch module, NCHW / OIHW).
# ---------------------------------------------------------------------------
def rdb_forward_ref(x, params):
    feat = x
    for (w, b) in params["dense"]:
        out = lax.conv_general_dilated(
            feat, w, window_strides=(1, 1), padding=((1, 1), (1, 1)),
            dimension_numbers=("NCHW", "OIHW", "NCHW"),
            precision=lax.Precision.HIGHEST) + b[None, :, None, None]
        out = jnp.maximum(out, 0.0)
        feat = jnp.concatenate([feat, out], axis=1)
    w1, b1 = params["conv1x1"]
    out = lax.conv_general_dilated(
        feat, w1, window_strides=(1, 1), padding=((0, 0), (0, 0)),
        dimension_numbers=("NCHW", "OIHW", "NCHW"),
        precision=lax.Precision.HIGHEST) + b1[None, :, None, None]
    return out + x


# ---------------------------------------------------------------------------
# Deterministic parameter init (matches the module's __init__ shapes).
# ---------------------------------------------------------------------------
def init_rdb_params(key, in_channels, growth_rate, num_layer):
    params = {"dense": []}
    c = in_channels
    for _ in range(num_layer):
        key, kw, kb = jax.random.split(key, 3)
        fan_in = c * 3 * 3
        w = jax.random.normal(kw, (growth_rate, c, 3, 3), jnp.float32) / np.sqrt(fan_in)
        b = jax.random.normal(kb, (growth_rate,), jnp.float32) * 0.01
        params["dense"].append((w, b))
        c += growth_rate
    key, kw, kb = jax.random.split(key, 3)
    w1 = jax.random.normal(kw, (in_channels, c, 1, 1), jnp.float32) / np.sqrt(c)
    b1 = jax.random.normal(kb, (in_channels,), jnp.float32) * 0.01
    params["conv1x1"] = (w1, b1)
    return params


if __name__ == "__main__":
    # Small shapes: batch=2, in_channels=4, growthRate=4, num_layer=3, 16x16.
    key = jax.random.PRNGKey(0)
    key, kx, kp = jax.random.split(key, 3)

    N, C, H, W = 2, 4, 16, 16
    growth_rate, num_layer = 4, 3

    x = jax.random.normal(kx, (N, C, H, W), jnp.float32)
    params = init_rdb_params(kp, C, growth_rate, num_layer)

    rdb_jit = jax.jit(rdb_forward_pallas)
    out = jax.block_until_ready(rdb_jit(x, params))
    ref = jax.block_until_ready(rdb_forward_ref(x, params))

    assert out.shape == (N, C, H, W), out.shape
    np.testing.assert_allclose(np.asarray(out), np.asarray(ref),
                               rtol=2e-3, atol=2e-3)
    print("KERNEL_OK")
</pallas_src>

<mosaic_0001>
module attributes {stable_mosaic.version = 11 : i64} {
  func.func @kernel(%arg0: i32, %arg1: memref<1x4x324xf32, #tpu.memory_space<vmem>>, %arg2: memref<1x286xf32, #tpu.memory_space<vmem>>, %arg3: memref<4x144xf32, #tpu.memory_space<vmem>>, %arg4: memref<4x1xf32, #tpu.memory_space<vmem>>, %arg5: memref<4x144xf32, #tpu.memory_space<vmem>>, %arg6: memref<4x1xf32, #tpu.memory_space<vmem>>, %arg7: memref<4x144xf32, #tpu.memory_space<vmem>>, %arg8: memref<4x1xf32, #tpu.memory_space<vmem>>, %arg9: memref<4x16xf32, #tpu.memory_space<vmem>>, %arg10: memref<4x1xf32, #tpu.memory_space<vmem>>, %arg11: memref<1x4x288xf32, #tpu.memory_space<vmem>>, %arg12: memref<16x324xf32, #tpu.memory_space<vmem>>, %arg13: memref<144x286xf32, #tpu.memory_space<vmem>>) attributes {dimension_semantics = [#tpu.dimension_semantics<parallel>], iteration_bounds = array<i64: 2>, scalar_prefetch = 0 : i64, scratch_operands = 2 : i64, tpu.core_type = #tpu.core_type<tc>, window_params = [{transform_indices = @transform_0, window_bounds = array<i64: 1, 4, 324>}, {pipeline_mode = #tpu.pipeline_mode<synchronous>, transform_indices = @transform_1, window_bounds = array<i64: 1, 286>}, {pipeline_mode = #tpu.pipeline_mode<synchronous>, transform_indices = @transform_2, window_bounds = array<i64: 4, 144>}, {pipeline_mode = #tpu.pipeline_mode<synchronous>, transform_indices = @transform_3, window_bounds = array<i64: 4, 1>}, {pipeline_mode = #tpu.pipeline_mode<synchronous>, transform_indices = @transform_4, window_bounds = array<i64: 4, 144>}, {pipeline_mode = #tpu.pipeline_mode<synchronous>, transform_indices = @transform_5, window_bounds = array<i64: 4, 1>}, {pipeline_mode = #tpu.pipeline_mode<synchronous>, transform_indices = @transform_6, window_bounds = array<i64: 4, 144>}, {pipeline_mode = #tpu.pipeline_mode<synchronous>, transform_indices = @transform_7, window_bounds = array<i64: 4, 1>}, {pipeline_mode = #tpu.pipeline_mode<synchronous>, transform_indices = @transform_8, window_bounds = array<i64: 4, 16>}, {pipeline_mode = #tpu.pipeline_mode<synchronous>, transform_indices = @transform_9, window_bounds = array<i64: 4, 1>}, {transform_indices = @transform_10, window_bounds = array<i64: 1, 4, 288>}]} {
    %cst = arith.constant 0.000000e+00 : f32
    %0 = vector.broadcast %cst : f32 to vector<12x324xf32>
    %c4 = arith.constant 4 : index
    %c0 = arith.constant 0 : index
    %1 = vector.load %arg12[%c4, %c0] : memref<16x324xf32, #tpu.memory_space<vmem>>, vector<12x324xf32>
    tpu.vector_store %arg12[%c4, %c0], %0 {strides = array<i32>} : memref<16x324xf32, #tpu.memory_space<vmem>>, vector<12x324xf32>,
    %c0_0 = arith.constant 0 : index
    %c0_1 = arith.constant 0 : index
    %c0_2 = arith.constant 0 : index
    %2 = vector.load %arg1[%c0_0, %c0_1, %c0_2] : memref<1x4x324xf32, #tpu.memory_space<vmem>>, vector<1x4x324xf32>
    %3 = vector.shape_cast %2 : vector<1x4x324xf32> to vector<4x324xf32>
    %c0_3 = arith.constant 0 : index
    %c0_4 = arith.constant 0 : index
    %4 = vector.load %arg12[%c0_3, %c0_4] : memref<16x324xf32, #tpu.memory_space<vmem>>, vector<4x324xf32>
    tpu.vector_store %arg12[%c0_3, %c0_4], %3 {strides = array<i32>} : memref<16x324xf32, #tpu.memory_space<vmem>>, vector<4x324xf32>,
    %cst_5 = arith.constant 0.000000e+00 : f32
    %5 = vector.broadcast %cst_5 : f32 to vector<144x286xf32>
    %c0_6 = arith.constant 0 : index
    %c0_7 = arith.constant 0 : index
    %6 = vector.load %arg13[%c0_6, %c0_7] : memref<144x286xf32, #tpu.memory_space<vmem>>, vector<144x286xf32>
    tpu.vector_store %arg13[%c0_6, %c0_7], %5 {strides = array<i32>} : memref<144x286xf32, #tpu.memory_space<vmem>>, vector<144x286xf32>,
    %c0_8 = arith.constant 0 : index
    %c0_9 = arith.constant 0 : index
    %7 = vector.load %arg2[%c0_8, %c0_9] : memref<1x286xf32, #tpu.memory_space<vmem>>, vector<1x286xf32>
    %c0_10 = arith.constant 0 : index
    %c0_11 = arith.constant 0 : index
    %8 = vector.load %arg12[%c0_10, %c0_11] : memref<16x324xf32, #tpu.memory_space<vmem>>, vector<4x286xf32>
    %c0_12 = arith.constant 0 : index
    %c0_13 = arith.constant 0 : index
    %9 = vector.load %arg13[%c0_12, %c0_13] : memref<144x286xf32, #tpu.memory_space<vmem>>, vector<4x286xf32>
    tpu.vector_store %arg13[%c0_12, %c0_13], %8 {strides = array<i32>} : memref<144x286xf32, #tpu.memory_space<vmem>>, vector<4x286xf32>,
    %c0_14 = arith.constant 0 : index
    %c1 = arith.constant 1 : index
    %10 = vector.load %arg12[%c0_14, %c1] : memref<16x324xf32, #tpu.memory_space<vmem>>, vector<4x286xf32>
    %c16 = arith.constant 16 : index
    %c0_15 = arith.constant 0 : index
    %11 = vector.load %arg13[%c16, %c0_15] : memref<144x286xf32, #tpu.memory_space<vmem>>, vector<4x286xf32>
    tpu.vector_store %arg13[%c16, %c0_15], %10 {strides = array<i32>} : memref<144x286xf32, #tpu.memory_space<vmem>>, vector<4x286xf32>,
    %c0_16 = arith.constant 0 : index
    %c2 = arith.constant 2 : index
    %12 = vector.load %arg12[%c0_16, %c2] : memref<16x324xf32, #tpu.memory_space<vmem>>, vector<4x286xf32>
    %c32 = arith.constant 32 : index
    %c0_17 = arith.constant 0 : index
    %13 = vector.load %arg13[%c32, %c0_17] : memref<144x286xf32, #tpu.memory_space<vmem>>, vector<4x286xf32>
    tpu.vector_store %arg13[%c32, %c0_17], %12 {strides = array<i32>} : memref<144x286xf32, #tpu.memory_space<vmem>>, vector<4x286xf32>,
    %c0_18 = arith.constant 0 : index
    %c18 = arith.constant 18 : index
    %14 = vector.load %arg12[%c0_18, %c18] : memref<16x324xf32, #tpu.memory_space<vmem>>, vector<4x286xf32>
    %c48 = arith.constant 48 : index
    %c0_19 = arith.constant 0 : index
    %15 = vector.load %arg13[%c48, %c0_19] : memref<144x286xf32, #tpu.memory_space<vmem>>, vector<4x286xf32>
    tpu.vector_store %arg13[%c48, %c0_19], %14 {strides = array<i32>} : memref<144x286xf32, #tpu.memory_space<vmem>>, vector<4x286xf32>,
    %c0_20 = arith.constant 0 : index
    %c19 = arith.constant 19 : index
    %16 = vector.load %arg12[%c0_20, %c19] : memref<16x324xf32, #tpu.memory_space<vmem>>, vector<4x286xf32>
    %c64 = arith.constant 64 : index
    %c0_21 = arith.constant 0 : index
    %17 = vector.load %arg13[%c64, %c0_21] : memref<144x286xf32, #tpu.memory_space<vmem>>, vector<4x286xf32>
    tpu.vector_store %arg13[%c64, %c0_21], %16 {strides = array<i32>} : memref<144x286xf32, #tpu.memory_space<vmem>>, vector<4x286xf32>,
    %c0_22 = arith.constant 0 : index
    %c20 = arith.constant 20 : index
    %18 = vector.load %arg12[%c0_22, %c20] : memref<16x324xf32, #tpu.memory_space<vmem>>, vector<4x286xf32>
    %c80 = arith.constant 80 : index
    %c0_23 = arith.constant 0 : index
    %19 = vector.load %arg13[%c80, %c0_23] : memref<144x286xf32, #tpu.memory_space<vmem>>, vector<4x286xf32>
    tpu.vector_store %arg13[%c80, %c0_23], %18 {strides = array<i32>} : memref<144x286xf32, #tpu.memory_space<vmem>>, vector<4x286xf32>,
    %c0_24 = arith.constant 0 : index
    %c36 = arith.constant 36 : index
    %20 = vector.load %arg12[%c0_24, %c36] : memref<16x324xf32, #tpu.memory_space<vmem>>, vector<4x286xf32>
    %c96 = arith.constant 96 : index
    %c0_25 = arith.constant 0 : index
    %21 = vector.load %arg13[%c96, %c0_25] : memref<144x286xf32, #tpu.memory_space<vmem>>, vector<4x286xf32>
    tpu.vector_store %arg13[%c96, %c0_25], %20 {strides = array<i32>} : memref<144x286xf32, #tpu.memory_space<vmem>>, vector<4x286xf32>,
    %c0_26 = arith.constant 0 : index
    %c37 = arith.constant 37 : index
    %22 = vector.load %arg12[%c0_26, %c37] : memref<16x324xf32, #tpu.memory_space<vmem>>, vector<4x286xf32>
    %c112 = arith.constant 112 : index
    %c0_27 = arith.constant 0 : index
    %23 = vector.load %arg13[%c112, %c0_27] : memref<144x286xf32, #tpu.memory_space<vmem>>, vector<4x286xf32>
    tpu.vector_store %arg13[%c112, %c0_27], %22 {strides = array<i32>} : memref<144x286xf32, #tpu.memory_space<vmem>>, vector<4x286xf32>,
    %c0_28 = arith.constant 0 : index
    %c38 = arith.constant 38 : index
    %24 = vector.load %arg12[%c0_28, %c38] : memref<16x324xf32, #tpu.memory_space<vmem>>, vector<4x286xf32>
    %c128 = arith.constant 128 : index
    %c0_29 = arith.constant 0 : index
    %25 = vector.load %arg13[%c128, %c0_29] : memref<144x286xf32, #tpu.memory_space<vmem>>, vector<4x286xf32>
    tpu.vector_store %arg13[%c128, %c0_29], %24 {strides = array<i32>} : memref<144x286xf32, #tpu.memory_space<vmem>>, vector<4x286xf32>,
    %c0_30 = arith.constant 0 : index
    %c0_31 = arith.constant 0 : index
    %26 = vector.load %arg3[%c0_30, %c0_31] : memref<4x144xf32, #tpu.memory_space<vmem>>, vector<4x144xf32>
    %c0_32 = arith.constant 0 : index
    %c0_33 = arith.constant 0 : index
    %27 = vector.load %arg13[%c0_32, %c0_33] : memref<144x286xf32, #tpu.memory_space<vmem>>, vector<144x286xf32>
    %cst_34 = arith.constant dense<0.000000e+00> : vector<4x286xf32>
    %28 = tpu.matmul %26, %27, %cst_34 {dimension_numbers = #tpu.dot_dimension_numbers<[1], [0], [0], [1], [0, 0, 1, 1], [], []>} : vector<4x144xf32>, vector<144x286xf32>, vector<4x286xf32> -> vector<4x286xf32>
    %c0_35 = arith.constant 0 : index
    %c0_36 = arith.constant 0 : index
    %29 = vector.load %arg4[%c0_35, %c0_36] : memref<4x1xf32, #tpu.memory_space<vmem>>, vector<4x1xf32>
    %30 = vector.broadcast %29 : vector<4x1xf32> to vector<4x286xf32>
    %31 = arith.addf %28, %30 : vector<4x286xf32>
    %cst_37 = arith.constant 0.000000e+00 : f32
    %32 = vector.broadcast %cst_37 : f32 to vector<4x286xf32>
    %33 = arith.maximumf %31, %32 : vector<4x286xf32>
    %34 = vector.broadcast %7 : vector<1x286xf32> to vector<4x286xf32>
    %35 = arith.mulf %33, %34 : vector<4x286xf32>
    %c4_38 = arith.constant 4 : index
    %c19_39 = arith.constant 19 : index
    %36 = vector.load %arg12[%c4_38, %c19_39] : memref<16x324xf32, #tpu.memory_space<vmem>>, vector<4x286xf32>
    tpu.vector_store %arg12[%c4_38, %c19_39], %35 {strides = array<i32>} : memref<16x324xf32, #tpu.memory_space<vmem>>, vector<4x286xf32>,
    %c0_40 = arith.constant 0 : index
    %c0_41 = arith.constant 0 : index
    %37 = vector.load %arg12[%c0_40, %c0_41] : memref<16x324xf32, #tpu.memory_space<vmem>>, vector<8x286xf32>
    %c0_42 = arith.constant 0 : index
    %c0_43 = arith.constant 0 : index
    %38 = vector.load %arg13[%c0_42, %c0_43] : memref<144x286xf32, #tpu.memory_space<vmem>>, vector<8x286xf32>
    tpu.vector_store %arg13[%c0_42, %c0_43], %37 {strides = array<i32>} : memref<144x286xf32, #tpu.memory_space<vmem>>, vector<8x286xf32>,
    %c0_44 = arith.constant 0 : index
    %c1_45 = arith.constant 1 : index
    %39 = vector.load %arg12[%c0_44, %c1_45] : memref<16x324xf32, #tpu.memory_space<vmem>>, vector<8x286xf32>
    %c16_46 = arith.constant 16 : index
    %c0_47 = arith.constant 0 : index
    %40 = vector.load %arg13[%c16_46, %c0_47] : memref<144x286xf32, #tpu.memory_space<vmem>>, vector<8x286xf32>
    tpu.vector_store %arg13[%c16_46, %c0_47], %39 {strides = array<i32>} : memref<144x286xf32, #tpu.memory_space<vmem>>, vector<8x286xf32>,
    %c0_48 = arith.constant 0 : index
    %c2_49 = arith.constant 2 : index
    %41 = vector.load %arg12[%c0_48, %c2_49] : memref<16x324xf32, #tpu.memory_space<vmem>>, vector<8x286xf32>
    %c32_50 = arith.constant 32 : index
    %c0_51 = arith.constant 0 : index
    %42 = vector.load %arg13[%c32_50, %c0_51] : memref<144x286xf32, #tpu.memory_space<vmem>>, vector<8x286xf32>
    tpu.vector_store %arg13[%c32_50, %c0_51], %41 {strides = array<i32>} : memref<144x286xf32, #tpu.memory_space<vmem>>, vector<8x286xf32>,
    %c0_52 = arith.constant 0 : index
    %c18_53 = arith.constant 18 : index
    %43 = vector.load %arg12[%c0_52, %c18_53] : memref<16x324xf32, #tpu.memory_space<vmem>>, vector<8x286xf32>
    %c48_54 = arith.constant 48 : index
    %c0_55 = arith.constant 0 : index
    %44 = vector.load %arg13[%c48_54, %c0_55] : memref<144x286xf32, #tpu.memory_space<vmem>>, vector<8x286xf32>
    tpu.vector_store %arg13[%c48_54, %c0_55], %43 {strides = array<i32>} : memref<144x286xf32, #tpu.memory_space<vmem>>, vector<8x286xf32>,
    %c0_56 = arith.constant 0 : index
    %c19_57 = arith.constant 19 : index
    %45 = vector.load %arg12[%c0_56, %c19_57] : memref<16x324xf32, #tpu.memory_space<vmem>>, vector<8x286xf32>
    %c64_58 = arith.constant 64 : index
    %c0_59 = arith.constant 0 : index
    %46 = vector.load %arg13[%c64_58, %c0_59] : memref<144x286xf32, #tpu.memory_space<vmem>>, vector<8x286xf32>
    tpu.vector_store %arg13[%c64_58, %c0_59], %45 {strides = array<i32>} : memref<144x286xf32, #tpu.memory_space<vmem>>, vector<8x286xf32>,
    %c0_60 = arith.constant 0 : index
    %c20_61 = arith.constant 20 : index
    %47 = vector.load %arg12[%c0_60, %c20_61] : memref<16x324xf32, #tpu.memory_space<vmem>>, vector<8x286xf32>
    %c80_62 = arith.constant 80 : index
    %c0_63 = arith.constant 0 : index
    %48 = vector.load %arg13[%c80_62, %c0_63] : memref<144x286xf32, #tpu.memory_space<vmem>>, vector<8x286xf32>
    tpu.vector_store %arg13[%c80_62, %c0_63], %47 {strides = array<i32>} : memref<144x286xf32, #tpu.memory_space<vmem>>, vector<8x286xf32>,
    %c0_64 = arith.constant 0 : index
    %c36_65 = arith.constant 36 : index
    %49 = vector.load %arg12[%c0_64, %c36_65] : memref<16x324xf32, #tpu.memory_space<vmem>>, vector<8x286xf32>
    %c96_66 = arith.constant 96 : index
    %c0_67 = arith.constant 0 : index
    %50 = vector.load %arg13[%c96_66, %c0_67] : memref<144x286xf32, #tpu.memory_space<vmem>>, vector<8x286xf32>
    tpu.vector_store %arg13[%c96_66, %c0_67], %49 {strides = array<i32>} : memref<144x286xf32, #tpu.memory_space<vmem>>, vector<8x286xf32>,
    %c0_68 = arith.constant 0 : index
    %c37_69 = arith.constant 37 : index
    %51 = vector.load %arg12[%c0_68, %c37_69] : memref<16x324xf32, #tpu.memory_space<vmem>>, vector<8x286xf32>
    %c112_70 = arith.constant 112 : index
    %c0_71 = arith.constant 0 : index
    %52 = vector.load %arg13[%c112_70, %c0_71] : memref<144x286xf32, #tpu.memory_space<vmem>>, vector<8x286xf32>
    tpu.vector_store %arg13[%c112_70, %c0_71], %51 {strides = array<i32>} : memref<144x286xf32, #tpu.memory_space<vmem>>, vector<8x286xf32>,
    %c0_72 = arith.constant 0 : index
    %c38_73 = arith.constant 38 : index
    %53 = vector.load %arg12[%c0_72, %c38_73] : memref<16x324xf32, #tpu.memory_space<vmem>>, vector<8x286xf32>
    %c128_74 = arith.constant 128 : index
    %c0_75 = arith.constant 0 : index
    %54 = vector.load %arg13[%c128_74, %c0_75] : memref<144x286xf32, #tpu.memory_space<vmem>>, vector<8x286xf32>
    tpu.vector_store %arg13[%c128_74, %c0_75], %53 {strides = array<i32>} : memref<144x286xf32, #tpu.memory_space<vmem>>, vector<8x286xf32>,
    %c0_76 = arith.constant 0 : index
    %c0_77 = arith.constant 0 : index
    %55 = vector.load %arg5[%c0_76, %c0_77] : memref<4x144xf32, #tpu.memory_space<vmem>>, vector<4x144xf32>
    %c0_78 = arith.constant 0 : index
    %c0_79 = arith.constant 0 : index
    %56 = vector.load %arg13[%c0_78, %c0_79] : memref<144x286xf32, #tpu.memory_space<vmem>>, vector<144x286xf32>
    %cst_80 = arith.constant dense<0.000000e+00> : vector<4x286xf32>
    %57 = tpu.matmul %55, %56, %cst_80 {dimension_numbers = #tpu.dot_dimension_numbers<[1], [0], [0], [1], [0, 0, 1, 1], [], []>} : vector<4x144xf32>, vector<144x286xf32>, vector<4x286xf32> -> vector<4x286xf32>
    %c0_81 = arith.constant 0 : index
    %c0_82 = arith.constant 0 : index
    %58 = vector.load %arg6[%c0_81, %c0_82] : memref<4x1xf32, #tpu.memory_space<vmem>>, vector<4x1xf32>
    %59 = vector.broadcast %58 : vector<4x1xf32> to vector<4x286xf32>
    %60 = arith.addf %57, %59 : vector<4x286xf32>
    %cst_83 = arith.constant 0.000000e+00 : f32
    %61 = vector.broadcast %cst_83 : f32 to vector<4x286xf32>
    %62 = arith.maximumf %60, %61 : vector<4x286xf32>
    %63 = vector.broadcast %7 : vector<1x286xf32> to vector<4x286xf32>
    %64 = arith.mulf %62, %63 : vector<4x286xf32>
    %c8 = arith.constant 8 : index
    %c19_84 = arith.constant 19 : index
    %65 = vector.load %arg12[%c8, %c19_84] : memref<16x324xf32, #tpu.memory_space<vmem>>, vector<4x286xf32>
    tpu.vector_store %arg12[%c8, %c19_84], %64 {strides = array<i32>} : memref<16x324xf32, #tpu.memory_space<vmem>>, vector<4x286xf32>,
    %c0_85 = arith.constant 0 : index
    %c0_86 = arith.constant 0 : index
    %66 = vector.load %arg12[%c0_85, %c0_86] : memref<16x324xf32, #tpu.memory_space<vmem>>, vector<12x286xf32>
    %c0_87 = arith.constant 0 : index
    %c0_88 = arith.constant 0 : index
    %67 = vector.load %arg13[%c0_87, %c0_88] : memref<144x286xf32, #tpu.memory_space<vmem>>, vector<12x286xf32>
    tpu.vector_store %arg13[%c0_87, %c0_88], %66 {strides = array<i32>} : memref<144x286xf32, #tpu.memory_space<vmem>>, vector<12x286xf32>,
    %c0_89 = arith.constant 0 : index
    %c1_90 = arith.constant 1 : index
    %68 = vector.load %arg12[%c0_89, %c1_90] : memref<16x324xf32, #tpu.memory_space<vmem>>, vector<12x286xf32>
    %c16_91 = arith.constant 16 : index
    %c0_92 = arith.constant 0 : index
    %69 = vector.load %arg13[%c16_91, %c0_92] : memref<144x286xf32, #tpu.memory_space<vmem>>, vector<12x286xf32>
    tpu.vector_store %arg13[%c16_91, %c0_92], %68 {strides = array<i32>} : memref<144x286xf32, #tpu.memory_space<vmem>>, vector<12x286xf32>,
    %c0_93 = arith.constant 0 : index
    %c2_94 = arith.constant 2 : index
    %70 = vector.load %arg12[%c0_93, %c2_94] : memref<16x324xf32, #tpu.memory_space<vmem>>, vector<12x286xf32>
    %c32_95 = arith.constant 32 : index
    %c0_96 = arith.constant 0 : index
    %71 = vector.load %arg13[%c32_95, %c0_96] : memref<144x286xf32, #tpu.memory_space<vmem>>, vector<12x286xf32>
    tpu.vector_store %arg13[%c32_95, %c0_96], %70 {strides = array<i32>} : memref<144x286xf32, #tpu.memory_space<vmem>>, vector<12x286xf32>,
    %c0_97 = arith.constant 0 : index
    %c18_98 = arith.constant 18 : index
    %72 = vector.load %arg12[%c0_97, %c18_98] : memref<16x324xf32, #tpu.memory_space<vmem>>, vector<12x286xf32>
    %c48_99 = arith.constant 48 : index
    %c0_100 = arith.constant 0 : index
    %73 = vector.load %arg13[%c48_99, %c0_100] : memref<144x286xf32, #tpu.memory_space<vmem>>, vector<12x286xf32>
    tpu.vector_store %arg13[%c48_99, %c0_100], %72 {strides = array<i32>} : memref<144x286xf32, #tpu.memory_space<vmem>>, vector<12x286xf32>,
    %c0_101 = arith.constant 0 : index
    %c19_102 = arith.constant 19 : index
    %74 = vector.load %arg12[%c0_101, %c19_102] : memref<16x324xf32, #tpu.memory_space<vmem>>, vector<12x286xf32>
    %c64_103 = arith.constant 64 : index
    %c0_104 = arith.constant 0 : index
    %75 = vector.load %arg13[%c64_103, %c0_104] : memref<144x286xf32, #tpu.memory_space<vmem>>, vector<12x286xf32>
    tpu.vector_store %arg13[%c64_103, %c0_104], %74 {strides = array<i32>} : memref<144x286xf32, #tpu.memory_space<vmem>>, vector<12x286xf32>,
    %c0_105 = arith.constant 0 : index
    %c20_106 = arith.constant 20 : index
    %76 = vector.load %arg12[%c0_105, %c20_106] : memref<16x324xf32, #tpu.memory_space<vmem>>, vector<12x286xf32>
    %c80_107 = arith.constant 80 : index
    %c0_108 = arith.constant 0 : index
    %77 = vector.load %arg13[%c80_107, %c0_108] : memref<144x286xf32, #tpu.memory_space<vmem>>, vector<12x286xf32>
    tpu.vector_store %arg13[%c80_107, %c0_108], %76 {strides = array<i32>} : memref<144x286xf32, #tpu.memory_space<vmem>>, vector<12x286xf32>,
    %c0_109 = arith.constant 0 : index
    %c36_110 = arith.constant 36 : index
    %78 = vector.load %arg12[%c0_109, %c36_110] : memref<16x324xf32, #tpu.memory_space<vmem>>, vector<12x286xf32>
    %c96_111 = arith.constant 96 : index
    %c0_112 = arith.constant 0 : index
    %79 = vector.load %arg13[%c96_111, %c0_112] : memref<144x286xf32, #tpu.memory_space<vmem>>, vector<12x286xf32>
    tpu.vector_store %arg13[%c96_111, %c0_112], %78 {strides = array<i32>} : memref<144x286xf32, #tpu.memory_space<vmem>>, vector<12x286xf32>,
    %c0_113 = arith.constant 0 : index
    %c37_114 = arith.constant 37 : index
    %80 = vector.load %arg12[%c0_113, %c37_114] : memref<16x324xf32, #tpu.memory_space<vmem>>, vector<12x286xf32>
    %c112_115 = arith.constant 112 : index
    %c0_116 = arith.constant 0 : index
    %81 = vector.load %arg13[%c112_115, %c0_116] : memref<144x286xf32, #tpu.memory_space<vmem>>, vector<12x286xf32>
    tpu.vector_store %arg13[%c112_115, %c0_116], %80 {strides = array<i32>} : memref<144x286xf32, #tpu.memory_space<vmem>>, vector<12x286xf32>,
    %c0_117 = arith.constant 0 : index
    %c38_118 = arith.constant 38 : index
    %82 = vector.load %arg12[%c0_117, %c38_118] : memref<16x324xf32, #tpu.memory_space<vmem>>, vector<12x286xf32>
    %c128_119 = arith.constant 128 : index
    %c0_120 = arith.constant 0 : index
    %83 = vector.load %arg13[%c128_119, %c0_120] : memref<144x286xf32, #tpu.memory_space<vmem>>, vector<12x286xf32>
    tpu.vector_store %arg13[%c128_119, %c0_120], %82 {strides = array<i32>} : memref<144x286xf32, #tpu.memory_space<vmem>>, vector<12x286xf32>,
    %c0_121 = arith.constant 0 : index
    %c0_122 = arith.constant 0 : index
    %84 = vector.load %arg7[%c0_121, %c0_122] : memref<4x144xf32, #tpu.memory_space<vmem>>, vector<4x144xf32>
    %c0_123 = arith.constant 0 : index
    %c0_124 = arith.constant 0 : index
    %85 = vector.load %arg13[%c0_123, %c0_124] : memref<144x286xf32, #tpu.memory_space<vmem>>, vector<144x286xf32>
    %cst_125 = arith.constant dense<0.000000e+00> : vector<4x286xf32>
    %86 = tpu.matmul %84, %85, %cst_125 {dimension_numbers = #tpu.dot_dimension_numbers<[1], [0], [0], [1], [0, 0, 1, 1], [], []>} : vector<4x144xf32>, vector<144x286xf32>, vector<4x286xf32> -> vector<4x286xf32>
    %c0_126 = arith.constant 0 : index
    %c0_127 = arith.constant 0 : index
    %87 = vector.load %arg8[%c0_126, %c0_127] : memref<4x1xf32, #tpu.memory_space<vmem>>, vector<4x1xf32>
    %88 = vector.broadcast %87 : vector<4x1xf32> to vector<4x286xf32>
    %89 = arith.addf %86, %88 : vector<4x286xf32>
    %cst_128 = arith.constant 0.000000e+00 : f32
    %90 = vector.broadcast %cst_128 : f32 to vector<4x286xf32>
    %91 = arith.maximumf %89, %90 : vector<4x286xf32>
    %92 = vector.broadcast %7 : vector<1x286xf32> to vector<4x286xf32>
    %93 = arith.mulf %91, %92 : vector<4x286xf32>
    %c12 = arith.constant 12 : index
    %c19_129 = arith.constant 19 : index
    %94 = vector.load %arg12[%c12, %c19_129] : memref<16x324xf32, #tpu.memory_space<vmem>>, vector<4x286xf32>
    tpu.vector_store %arg12[%c12, %c19_129], %93 {strides = array<i32>} : memref<16x324xf32, #tpu.memory_space<vmem>>, vector<4x286xf32>,
    %c0_130 = arith.constant 0 : index
    %c19_131 = arith.constant 19 : index
    %95 = vector.load %arg12[%c0_130, %c19_131] : memref<16x324xf32, #tpu.memory_space<vmem>>, vector<16x288xf32>
    %c0_132 = arith.constant 0 : index
    %c19_133 = arith.constant 19 : index
    %96 = vector.load %arg12[%c0_132, %c19_133] : memref<16x324xf32, #tpu.memory_space<vmem>>, vector<4x288xf32>
    %c0_134 = arith.constant 0 : index
    %c0_135 = arith.constant 0 : index
    %97 = vector.load %arg9[%c0_134, %c0_135] : memref<4x16xf32, #tpu.memory_space<vmem>>, vector<4x16xf32>
    %cst_136 = arith.constant dense<0.000000e+00> : vector<4x288xf32>
    %98 = tpu.matmul %97, %95, %cst_136 {dimension_numbers = #tpu.dot_dimension_numbers<[1], [0], [0], [1], [0, 0, 1, 1], [], []>} : vector<4x16xf32>, vector<16x288xf32>, vector<4x288xf32> -> vector<4x288xf32>
    %c0_137 = arith.constant 0 : index
    %c0_138 = arith.constant 0 : index
    %99 = vector.load %arg10[%c0_137, %c0_138] : memref<4x1xf32, #tpu.memory_space<vmem>>, vector<4x1xf32>
    %100 = vector.broadcast %99 : vector<4x1xf32> to vector<4x288xf32>
    %101 = arith.addf %98, %100 : vector<4x288xf32>
    %102 = arith.addf %101, %96 : vector<4x288xf32>
    %c0_139 = arith.constant 0 : index
    %c0_140 = arith.constant 0 : index
    %c0_141 = arith.constant 0 : index
    %103 = vector.load %arg11[%c0_139, %c0_140, %c0_141] : memref<1x4x288xf32, #tpu.memory_space<vmem>>, vector<1x4x288xf32>
    %104 = vector.shape_cast %103 : vector<1x4x288xf32> to vector<4x288xf32>
    %105 = vector.shape_cast %102 : vector<4x288xf32> to vector<1x4x288xf32>
    tpu.vector_store %arg11[%c0_139, %c0_140, %c0_141], %105 {strides = array<i32>} : memref<1x4x288xf32, #tpu.memory_space<vmem>>, vector<1x4x288xf32>,
    return
  }
  func.func @transform_0(%arg0: i32) -> (i32, i32, i32) {
    %c0_i32 = arith.constant 0 : i32
    %c0_i32_0 = arith.constant 0 : i32
    %c0_i32_1 = arith.constant 0 : i32
    return %arg0, %c0_i32, %c0_i32_0 : i32, i32, i32
  }
  func.func @transform_1(%arg0: i32) -> (i32, i32) {
    %c0_i32 = arith.constant 0 : i32
    %c0_i32_0 = arith.constant 0 : i32
    %c0_i32_1 = arith.constant 0 : i32
    return %c0_i32, %c0_i32_0 : i32, i32
  }
  func.func @transform_2(%arg0: i32) -> (i32, i32) {
    %c0_i32 = arith.constant 0 : i32
    %c0_i32_0 = arith.constant 0 : i32
    %c0_i32_1 = arith.constant 0 : i32
    return %c0_i32, %c0_i32_0 : i32, i32
  }
  func.func @transform_3(%arg0: i32) -> (i32, i32) {
    %c0_i32 = arith.constant 0 : i32
    %c0_i32_0 = arith.constant 0 : i32
    %c0_i32_1 = arith.constant 0 : i32
    return %c0_i32, %c0_i32_0 : i32, i32
  }
  func.func @transform_4(%arg0: i32) -> (i32, i32) {
    %c0_i32 = arith.constant 0 : i32
    %c0_i32_0 = arith.constant 0 : i32
    %c0_i32_1 = arith.constant 0 : i32
    return %c0_i32, %c0_i32_0 : i32, i32
  }
  func.func @transform_5(%arg0: i32) -> (i32, i32) {
    %c0_i32 = arith.constant 0 : i32
    %c0_i32_0 = arith.constant 0 : i32
    %c0_i32_1 = arith.constant 0 : i32
    return %c0_i32, %c0_i32_0 : i32, i32
  }
  func.func @transform_6(%arg0: i32) -> (i32, i32) {
    %c0_i32 = arith.constant 0 : i32
    %c0_i32_0 = arith.constant 0 : i32
    %c0_i32_1 = arith.constant 0 : i32
    return %c0_i32, %c0_i32_0 : i32, i32
  }
  func.func @transform_7(%arg0: i32) -> (i32, i32) {
    %c0_i32 = arith.constant 0 : i32
    %c0_i32_0 = arith.constant 0 : i32
    %c0_i32_1 = arith.constant 0 : i32
    return %c0_i32, %c0_i32_0 : i32, i32
  }
  func.func @transform_8(%arg0: i32) -> (i32, i32) {
    %c0_i32 = arith.constant 0 : i32
    %c0_i32_0 = arith.constant 0 : i32
    %c0_i32_1 = arith.constant 0 : i32
    return %c0_i32, %c0_i32_0 : i32, i32
  }
  func.func @transform_9(%arg0: i32) -> (i32, i32) {
    %c0_i32 = arith.constant 0 : i32
    %c0_i32_0 = arith.constant 0 : i32
    %c0_i32_1 = arith.constant 0 : i32
    return %c0_i32, %c0_i32_0 : i32, i32
  }
  func.func @transform_10(%arg0: i32) -> (i32, i32, i32) {
    %c0_i32 = arith.constant 0 : i32
    %c0_i32_0 = arith.constant 0 : i32
    %c0_i32_1 = arith.constant 0 : i32
    return %arg0, %c0_i32, %c0_i32_0 : i32, i32, i32
  }
}

</mosaic_0001>

<llo_original>
// kernel: rdb_forward_pallas.1
$region0: #{rdb_forward_pallas.1}
  #allocation0 [shape = 'u32[]', space=smem, size = 0x4, offset = 0x4, fixed_abs, tag = 'smem constant byte address 0x4 - core index']
  #allocation1 [shape = 'u32[72,128]{1,0:T(1,128)}', space=vmem, size = 0x9000, scoped, tag = 'internal scratch']
  #allocation2 [shape = 'f32[16,324]{1,0:T(8,128)}', space=vmem, size = 0x6000, scoped, tag = 'scratch operand']
  #allocation3 [shape = 'f32[144,286]{1,0:T(8,128)}', space=vmem, size = 0x36000, scoped, tag = 'scratch operand']
  %s0 = inlined_call_operand.vmem [shape: f32[2,4,324], index: 0, kind: input, shape index: {}]
  %s1 = inlined_call_operand.vmem [shape: f32[1,286], index: 1, kind: input, shape index: {}]
  %s2 = inlined_call_operand.vmem [shape: f32[4,144], index: 2, kind: input, shape index: {}]
  %s3 = inlined_call_operand.vmem [shape: f32[4,1], index: 3, kind: input, shape index: {}]
  %s4 = inlined_call_operand.vmem [shape: f32[4,144], index: 4, kind: input, shape index: {}]
  %s5 = inlined_call_operand.vmem [shape: f32[4,1], index: 5, kind: input, shape index: {}]
  %s6 = inlined_call_operand.vmem [shape: f32[4,144], index: 6, kind: input, shape index: {}]
  %s7 = inlined_call_operand.vmem [shape: f32[4,1], index: 7, kind: input, shape index: {}]
  %s8 = inlined_call_operand.vmem [shape: f32[4,16], index: 8, kind: input, shape index: {}]
  %s9 = inlined_call_operand.vmem [shape: f32[4,1], index: 9, kind: input, shape index: {}]
  %s10 = inlined_call_operand.vmem [shape: f32[2,4,288], index: 10, kind: output, shape index: {}]
  %s11 = sld [smem:[#allocation0]]
  $region73: #{rdb_forward_pallas.1} parent=0
    _
  %s13 = ssub.s32 1, %s11
  %s14 = scalar_select 0, %s13, %s11
  loop: start=0, step=1, limit=4
  $region2: #{rdb_forward_pallas.1} parent=0 // loop_pre_header
    _
  $region3: #{rdb_forward_pallas.1} parent=0 // loop_header
    %s16 = sphi 0, %s20
    %p17 = scmp.ge.s32.totalorder %s16, 4
    %s26 = sphi 0, %s28
    %s29 = sphi 0, %s26
    %s30 = sphi 0, %s29
    %s46 = sphi 0, %s30
    %s50 = sphi 0, %s50
    %s52 = sphi 0, %s50
    %s53 = sphi 0, %s52
    %s67 = sphi 0, %s53
    %s71 = sphi 0, %s71
    %s73 = sphi 0, %s71
    %s74 = sphi 0, %s73
    %s88 = sphi 0, %s74
    %s92 = sphi 0, %s92
    %s94 = sphi 0, %s92
    %s95 = sphi 0, %s94
    %s109 = sphi 0, %s95
    %s113 = sphi 0, %s113
    %s115 = sphi 0, %s113
    %s116 = sphi 0, %s115
    %s130 = sphi 0, %s116
    %s134 = sphi 0, %s134
    %s136 = sphi 0, %s134
    %s137 = sphi 0, %s136
    %s151 = sphi 0, %s137
    %s155 = sphi 0, %s155
    %s157 = sphi 0, %s155
    %s158 = sphi 0, %s157
    %s172 = sphi 0, %s158
    %s176 = sphi 0, %s176
    %s178 = sphi 0, %s176
    %s179 = sphi 0, %s178
    %s193 = sphi 0, %s179
    %s197 = sphi 0, %s197
    %s199 = sphi 0, %s197
    %s200 = sphi 0, %s199
    %s214 = sphi 0, %s200
    %s218 = sphi 0, %s218
    %s220 = sphi 0, %s218
    %s221 = sphi 0, %s220
    %s235 = sphi 0, %s221
    %s241 = sphi 0, %s243
    %s244 = sphi 0, %s241
    %s245 = sphi 0, %s244
    %s261 = sphi 0, %s245
  $region4: #{rdb_forward_pallas.1} parent=0 // loop_header_branch
    %19 = sbr.rel (%p17) target = $region8
  $region5: #{rdb_forward_pallas.1} parent=0 // loop_body
    %s21 = ssub.s32 %s16, 1
    %s22 = ssub.s32 %s16, 2
    %s23 = sadd.s32 %s16, 1
    %s24 = ssub.s32 %s16, %s23
    %p25 = scmp.eq.s32.totalorder %s24, 0
    %s27 = sadd.s32 %s26, 1
    %s28 = scalar_select %p25, %s26, %s27
    %p31 = pneg %p25
    %p32 = scmp.eq.s32.totalorder %s16, 1
    %p33 = por %p31, %p32
    %p34 = scmp.ne.s32.totalorder %s26, %s29
    %p35 = scmp.eq.s32.totalorder %s16, 0
    %p36 = por %p34, %p35
    %p37 = scmp.ne.s32.totalorder %s26, %s29
    %p38 = scmp.eq.s32.totalorder %s21, 1
    %p39 = por %p37, %p38
    %p40 = scmp.ne.s32.totalorder %s29, %s30
    %p41 = scmp.eq.s32.totalorder %s21, 0
    %p42 = por %p40, %p41
    %p43 = scmp.ne.s32.totalorder %s29, %s30
    %p44 = scmp.eq.s32.totalorder %s22, 1
    %p45 = por %p43, %p44
    %p47 = scmp.ne.s32.totalorder %s30, %s46
    %p48 = scmp.eq.s32.totalorder %s22, 0
    %p49 = por %p47, %p48
    %s51 = sadd.s32 %s50, 1
    %p54 = scmp.eq.s32.totalorder %s16, 1
    %p55 = scmp.ne.s32.totalorder %s50, %s52
    %p56 = scmp.eq.s32.totalorder %s16, 0
    %p57 = por %p55, %p56
    %p58 = scmp.ne.s32.totalorder %s50, %s52
    %p59 = scmp.eq.s32.totalorder %s21, 1
    %p60 = por %p58, %p59
    %p61 = scmp.ne.s32.totalorder %s52, %s53
    %p62 = scmp.eq.s32.totalorder %s21, 0
    %p63 = por %p61, %p62
    %p64 = scmp.ne.s32.totalorder %s52, %s53
    %p65 = scmp.eq.s32.totalorder %s22, 1
    %p66 = por %p64, %p65
    %p68 = scmp.ne.s32.totalorder %s53, %s67
    %p69 = scmp.eq.s32.totalorder %s22, 0
    %p70 = por %p68, %p69
    %s72 = sadd.s32 %s71, 1
    %p75 = scmp.eq.s32.totalorder %s16, 1
    %p76 = scmp.ne.s32.totalorder %s71, %s73
    %p77 = scmp.eq.s32.totalorder %s16, 0
    %p78 = por %p76, %p77
    %p79 = scmp.ne.s32.totalorder %s71, %s73
    %p80 = scmp.eq.s32.totalorder %s21, 1
    %p81 = por %p79, %p80
    %p82 = scmp.ne.s32.totalorder %s73, %s74
    %p83 = scmp.eq.s32.totalorder %s21, 0
    %p84 = por %p82, %p83
    %p85 = scmp.ne.s32.totalorder %s73, %s74
    %p86 = scmp.eq.s32.totalorder %s22, 1
    %p87 = por %p85, %p86
    %p89 = scmp.ne.s32.totalorder %s74, %s88
    %p90 = scmp.eq.s32.totalorder %s22, 0
    %p91 = por %p89, %p90
    %s93 = sadd.s32 %s92, 1
    %p96 = scmp.eq.s32.totalorder %s16, 1
    %p97 = scmp.ne.s32.totalorder %s92, %s94
    %p98 = scmp.eq.s32.totalorder %s16, 0
    %p99 = por %p97, %p98
    %p100 = scmp.ne.s32.totalorder %s92, %s94
    %p101 = scmp.eq.s32.totalorder %s21, 1
    %p102 = por %p100, %p101
    %p103 = scmp.ne.s32.totalorder %s94, %s95
    %p104 = scmp.eq.s32.totalorder %s21, 0
    %p105 = por %p103, %p104
    %p106 = scmp.ne.s32.totalorder %s94, %s95
    %p107 = scmp.eq.s32.totalorder %s22, 1
    %p108 = por %p106, %p107
    %p110 = scmp.ne.s32.totalorder %s95, %s109
    %p111 = scmp.eq.s32.totalorder %s22, 0
    %p112 = por %p110, %p111
    %s114 = sadd.s32 %s113, 1
    %p117 = scmp.eq.s32.totalorder %s16, 1
    %p118 = scmp.ne.s32.totalorder %s113, %s115
    %p119 = scmp.eq.s32.totalorder %s16, 0
    %p120 = por %p118, %p119
    %p121 = scmp.ne.s32.totalorder %s113, %s115
    %p122 = scmp.eq.s32.totalorder %s21, 1
    %p123 = por %p121, %p122
    %p124 = scmp.ne.s32.totalorder %s115, %s116
    %p125 = scmp.eq.s32.totalorder %s21, 0
    %p126 = por %p124, %p125
    %p127 = scmp.ne.s32.totalorder %s115, %s116
    %p128 = scmp.eq.s32.totalorder %s22, 1
    %p129 = por %p127, %p128
    %p131 = scmp.ne.s32.totalorder %s116, %s130
    %p132 = scmp.eq.s32.totalorder %s22, 0
    %p133 = por %p131, %p132
    %s135 = sadd.s32 %s134, 1
    %p138 = scmp.eq.s32.totalorder %s16, 1
    %p139 = scmp.ne.s32.totalorder %s134, %s136
    %p140 = scmp.eq.s32.totalorder %s16, 0
    %p141 = por %p139, %p140
    %p142 = scmp.ne.s32.totalorder %s134, %s136
    %p143 = scmp.eq.s32.totalorder %s21, 1
    %p144 = por %p142, %p143
    %p145 = scmp.ne.s32.totalorder %s136, %s137
    %p146 = scmp.eq.s32.totalorder %s21, 0
    %p147 = por %p145, %p146
    %p148 = scmp.ne.s32.totalorder %s136, %s137
    %p149 = scmp.eq.s32.totalorder %s22, 1
    %p150 = por %p148, %p149
    %p152 = scmp.ne.s32.totalorder %s137, %s151
    %p153 = scmp.eq.s32.totalorder %s22, 0
    %p154 = por %p152, %p153
    %s156 = sadd.s32 %s155, 1
    %p159 = scmp.eq.s32.totalorder %s16, 1
    %p160 = scmp.ne.s32.totalorder %s155, %s157
    %p161 = scmp.eq.s32.totalorder %s16, 0
    %p162 = por %p160, %p161
    %p163 = scmp.ne.s32.totalorder %s155, %s157
    %p164 = scmp.eq.s32.totalorder %s21, 1
    %p165 = por %p163, %p164
    %p166 = scmp.ne.s32.totalorder %s157, %s158
    %p167 = scmp.eq.s32.totalorder %s21, 0
    %p168 = por %p166, %p167
    %p169 = scmp.ne.s32.totalorder %s157, %s158
    %p170 = scmp.eq.s32.totalorder %s22, 1
    %p171 = por %p169, %p170
    %p173 = scmp.ne.s32.totalorder %s158, %s172
    %p174 = scmp.eq.s32.totalorder %s22, 0
    %p175 = por %p173, %p174
    %s177 = sadd.s32 %s176, 1
    %p180 = scmp.eq.s32.totalorder %s16, 1
    %p181 = scmp.ne.s32.totalorder %s176, %s178
    %p182 = scmp.eq.s32.totalorder %s16, 0
    %p183 = por %p181, %p182
    %p184 = scmp.ne.s32.totalorder %s176, %s178
    %p185 = scmp.eq.s32.totalorder %s21, 1
    %p186 = por %p184, %p185
    %p187 = scmp.ne.s32.totalorder %s178, %s179
    %p188 = scmp.eq.s32.totalorder %s21, 0
    %p189 = por %p187, %p188
    %p190 = scmp.ne.s32.totalorder %s178, %s179
    %p191 = scmp.eq.s32.totalorder %s22, 1
    %p192 = por %p190, %p191
    %p194 = scmp.ne.s32.totalorder %s179, %s193
    %p195 = scmp.eq.s32.totalorder %s22, 0
    %p196 = por %p194, %p195
    %s198 = sadd.s32 %s197, 1
    %p201 = scmp.eq.s32.totalorder %s16, 1
    %p202 = scmp.ne.s32.totalorder %s197, %s199
    %p203 = scmp.eq.s32.totalorder %s16, 0
    %p204 = por %p202, %p203
    %p205 = scmp.ne.s32.totalorder %s197, %s199
    %p206 = scmp.eq.s32.totalorder %s21, 1
    %p207 = por %p205, %p206
    %p208 = scmp.ne.s32.totalorder %s199, %s200
    %p209 = scmp.eq.s32.totalorder %s21, 0
    %p210 = por %p208, %p209
    %p211 = scmp.ne.s32.totalorder %s199, %s200
    %p212 = scmp.eq.s32.totalorder %s22, 1
    %p213 = por %p211, %p212
    %p215 = scmp.ne.s32.totalorder %s200, %s214
    %p216 = scmp.eq.s32.totalorder %s22, 0
    %p217 = por %p215, %p216
    %s219 = sadd.s32 %s218, 1
    %p222 = scmp.eq.s32.totalorder %s16, 1
    %p223 = scmp.ne.s32.totalorder %s218, %s220
    %p224 = scmp.eq.s32.totalorder %s16, 0
    %p225 = por %p223, %p224
    %p226 = scmp.ne.s32.totalorder %s218, %s220
    %p227 = scmp.eq.s32.totalorder %s21, 1
    %p228 = por %p226, %p227
    %p229 = scmp.ne.s32.totalorder %s220, %s221
    %p230 = scmp.eq.s32.totalorder %s21, 0
    %p231 = por %p229, %p230
    %p232 = scmp.ne.s32.totalorder %s220, %s221
    %p233 = scmp.eq.s32.totalorder %s22, 1
    %p234 = por %p232, %p233
    %p236 = scmp.ne.s32.totalorder %s221, %s235
    %p237 = scmp.eq.s32.totalorder %s22, 0
    %p238 = por %p236, %p237
    %s239 = ssub.s32 %s16, %s23
    %p240 = scmp.eq.s32.totalorder %s239, 0
    %s242 = sadd.s32 %s241, 1
    %s243 = scalar_select %p240, %s241, %s242
    %p246 = pneg %p240
    %p247 = scmp.eq.s32.totalorder %s16, 1
    %p248 = por %p246, %p247
    %p249 = scmp.ne.s32.totalorder %s241, %s244
    %p250 = scmp.eq.s32.totalorder %s16, 0
    %p251 = por %p249, %p250
    %p252 = scmp.ne.s32.totalorder %s241, %s244
    %p253 = scmp.eq.s32.totalorder %s21, 1
    %p254 = por %p252, %p253
    %p255 = scmp.ne.s32.totalorder %s244, %s245
    %p256 = scmp.eq.s32.totalorder %s21, 0
    %p257 = por %p255, %p256
    %p258 = scmp.ne.s32.totalorder %s244, %s245
    %p259 = scmp.eq.s32.totalorder %s22, 1
    %p260 = por %p258, %p259
    %p262 = scmp.ne.s32.totalorder %s245, %s261
    %p263 = scmp.eq.s32.totalorder %s22, 0
    %p264 = por %p262, %p263
    %p265 = scmp.le.s32.totalorder 1, %s16
    %p266 = scmp.lt.s32.totalorder %s16, 3
    %p267 = pnand %p265, %p266
    %p268 = pneg %p267
    // Predicated region
    $region9: #{rdb_forward_pallas.1} parent=5 // pred_check
      _
    $region10: #{rdb_forward_pallas.1} parent=5 // pred_check_branch
      %270 = sbr.rel (%p267) target = $region12
    $region11: #{rdb_forward_pallas.1} parent=5 // pred_region
      %s271 = ssub.s32 %s16, 1
      // Predicated region
      $region13: #{rdb_forward_pallas.1} parent=11 // pred_check
        %p272 = pneg %p63
      $region14: #{rdb_forward_pallas.1} parent=11 // pred_check_branch
        %274 = sbr.rel (%p272) target = $region16
      $region15: #{rdb_forward_pallas.1} parent=11 // pred_region
        _
      $region16: #{rdb_forward_pallas.1} parent=11 // pred_fallthru
        _
      // Predicated region
      $region17: #{rdb_forward_pallas.1} parent=11 // pred_check
        %p275 = pneg %p84
      $region18: #{rdb_forward_pallas.1} parent=11 // pred_check_branch
        %277 = sbr.rel (%p275) target = $region20
      $region19: #{rdb_forward_pallas.1} parent=11 // pred_region
        _
      $region20: #{rdb_forward_pallas.1} parent=11 // pred_fallthru
        _
      // Predicated region
      $region21: #{rdb_forward_pallas.1} parent=11 // pred_check
        %p278 = pneg %p105
      $region22: #{rdb_forward_pallas.1} parent=11 // pred_check_branch
        %280 = sbr.rel (%p278) target = $region24
      $region23: #{rdb_forward_pallas.1} parent=11 // pred_region
        _
      $region24: #{rdb_forward_pallas.1} parent=11 // pred_fallthru
        _
      // Predicated region
      $region25: #{rdb_forward_pallas.1} parent=11 // pred_check
        %p281 = pneg %p126
      $region26: #{rdb_forward_pallas.1} parent=11 // pred_check_branch
        %283 = sbr.rel (%p281) target = $region28
      $region27: #{rdb_forward_pallas.1} parent=11 // pred_region
        _
      $region28: #{rdb_forward_pallas.1} parent=11 // pred_fallthru
        _
      // Predicated region
      $region29: #{rdb_forward_pallas.1} parent=11 // pred_check
        %p284 = pneg %p147
      $region30: #{rdb_forward_pallas.1} parent=11 // pred_check_branch
        %286 = sbr.rel (%p284) target = $region32
      $region31: #{rdb_forward_pallas.1} parent=11 // pred_region
        _
      $region32: #{rdb_forward_pallas.1} parent=11 // pred_fallthru
        _
      // Predicated region
      $region33: #{rdb_forward_pallas.1} parent=11 // pred_check
        %p287 = pneg %p168
      $region34: #{rdb_forward_pallas.1} parent=11 // pred_check_branch
        %289 = sbr.rel (%p287) target = $region36
      $region35: #{rdb_forward_pallas.1} parent=11 // pred_region
        _
      $region36: #{rdb_forward_pallas.1} parent=11 // pred_fallthru
        _
      // Predicated region
      $region37: #{rdb_forward_pallas.1} parent=11 // pred_check
        %p290 = pneg %p189
      $region38: #{rdb_forward_pallas.1} parent=11 // pred_check_branch
        %292 = sbr.rel (%p290) target = $region40
      $region39: #{rdb_forward_pallas.1} parent=11 // pred_region
        _
      $region40: #{rdb_forward_pallas.1} parent=11 // pred_fallthru
        _
      // Predicated region
      $region41: #{rdb_forward_pallas.1} parent=11 // pred_check
        %p293 = pneg %p210
      $region42: #{rdb_forward_pallas.1} parent=11 // pred_check_branch
        %295 = sbr.rel (%p293) target = $region44
      $region43: #{rdb_forward_pallas.1} parent=11 // pred_region
        _
      $region44: #{rdb_forward_pallas.1} parent=11 // pred_fallthru
        _
      // Predicated region
      $region45: #{rdb_forward_pallas.1} parent=11 // pred_check
        %p296 = pneg %p231
      $region46: #{rdb_forward_pallas.1} parent=11 // pred_check_branch
        %298 = sbr.rel (%p296) target = $region48
      $region47: #{rdb_forward_pallas.1} parent=11 // pred_region
        _
      $region48: #{rdb_forward_pallas.1} parent=11 // pred_fallthru
        _
    $region12: #{rdb_forward_pallas.1} parent=5 // pred_fallthru
      _
    %p299 = scmp.lt.s32.totalorder %s16, 2
    // Predicated region
    $region49: #{rdb_forward_pallas.1} parent=5 // pred_check
      %p300 = pneg %p299
    $region50: #{rdb_forward_pallas.1} parent=5 // pred_check_branch
      %302 = sbr.rel (%p300) target = $region52
    $region51: #{rdb_forward_pallas.1} parent=5 // pred_region
      // Predicated region
      $region53: #{rdb_forward_pallas.1} parent=51 // pred_check
        %p303 = pneg %p36
      $region54: #{rdb_forward_pallas.1} parent=51 // pred_check_branch
        %305 = sbr.rel (%p303) target = $region56
      $region55: #{rdb_forward_pallas.1} parent=51 // pred_region
        %p306 = scmp.lt.s32.totalorder %s16, 1
        %s307 = scalar_select %p306, %s16, 1
        %s308 = smul.addr %s307, 3
        %s309 = smul.addr %s308, 4
        %s310 = scalar_lea.vmem %s0, %s309
      $region56: #{rdb_forward_pallas.1} parent=51 // pred_fallthru
        _
    $region52: #{rdb_forward_pallas.1} parent=5 // pred_fallthru
      _
    %p311 = scmp.le.s32.totalorder 1, %s16
    %p312 = scmp.lt.s32.totalorder %s16, 3
    %p313 = pnand %p311, %p312
    %p314 = pneg %p313
    // Predicated region
    $region57: #{rdb_forward_pallas.1} parent=5 // pred_check
      _
    $region58: #{rdb_forward_pallas.1} parent=5 // pred_check_branch
      %316 = sbr.rel (%p313) target = $region60
    $region59: #{rdb_forward_pallas.1} parent=5 // pred_region
      %s317 = ssub.s32 %s16, 1
      %p318 = scmp.lt.s32.totalorder %s21, 1
      %s319 = scalar_select %p318, %s21, 1
      %s320 = smul.addr %s319, 3
      %s321 = smul.addr %s320, 4
      %s322 = scalar_lea.vmem %s0, %s321
      %p323 = pneg %p42
      %p324 = pneg %p39
      %p325 = pneg %p63
      %p326 = pneg %p60
      %p327 = pneg %p84
      %p328 = pneg %p81
      %p329 = pneg %p105
      %p330 = pneg %p102
      %p331 = pneg %p126
      %p332 = pneg %p123
      %p333 = pneg %p147
      %p334 = pneg %p144
      %p335 = pneg %p168
      %p336 = pneg %p165
      %p337 = pneg %p189
      %p338 = pneg %p186
      %p339 = pneg %p210
      %p340 = pneg %p207
      %p341 = pneg %p231
      %p342 = pneg %p228
      %p343 = pneg %p257
      %p344 = pneg %p254
      %p345 = scmp.lt.s32.totalorder %s21, 1
      %s346 = scalar_select %p345, %s21, 1
      %s347 = smul.addr %s346, 3
      %s348 = smul.addr %s347, 4
      %s349 = scalar_lea.vmem %s10, %s348
      %p350 = scmp.lt.s32.totalorder %s21, 1
      %s351 = scalar_select %p350, %s21, 1
      %s352 = smul.addr %s351, 3
      %s353 = smul.addr %s352, 4
      %s354 = scalar_lea.vmem %s0, %s353
      %p355 = scmp.lt.s32.totalorder %s21, 1
      %s356 = scalar_select %p355, %s21, 1
      %s357 = smul.addr %s356, 3
      %s358 = smul.addr %s357, 4
      %s359 = scalar_lea.vmem %s10, %s358
      %360 = vst [vmem:[#allocation2] sm:$0xf0] 0.0
      %361 = vst [vmem:[#allocation2 + $0x8] sm:$0xf0] 0.0
      %vm362 = vcmask 556036
      %363 = vst.msk [vmem:[#allocation2 + $0x10] sm:$0xf0] %vm362, 0.0
      %364 = vst [vmem:[#allocation2 + $0x18] sm:$0xff] 0.0
      %365 = vst [vmem:[#allocation2 + $0x20] sm:$0xff] 0.0
      %vm366 = vcmask 556032
      %367 = vst.msk [vmem:[#allocation2 + $0x28] sm:$0xff] %vm366, 0.0
      %v368 = vld [vmem:[%s354] sm:$0xff]
      %v369 = vld [vmem:[%s354 + $0x8] sm:$0xf]
      %372 = vst [vmem:[#allocation1] ss:$2 sm:$0xff] %v368
      %s373 = scalar_lea.vmem [#allocation1], 16
      %374 = vst [vmem:[%s373] ss:$2 sm:$0xff] %v369
      %v375 = vld.sshfl [vmem:[#allocation1] sm:$0xff pattern:$0x75316420]
      %v376 = vld.sshfl [vmem:[#allocation1 + $0x8] sm:$0xff pattern:$0x75316420]
      %v377 = vld.sshfl [vmem:[#allocation1 + $0x10] sm:$0xff pattern:$0x75316420]
      %381 = vst [vmem:[#allocation2] sm:$0xf] %v375
      %382 = vst [vmem:[#allocation2 + $0x8] sm:$0xf] %v376
      %vm383 = vcmask 551936
      %384 = vst.msk [vmem:[#allocation2 + $0x10] sm:$0xf] %vm383, %v377
      %385 = vst [vmem:[#allocation3] sm:$0xff] 0.0
      %386 = vst [vmem:[#allocation3 + $0x8] sm:$0xff] 0.0
      %vm387 = vcmask 244736
      %388 = vst.msk [vmem:[#allocation3 + $0x10] sm:$0xff] %vm387, 0.0
      %389 = vst [vmem:[#allocation3 + $0x18] sm:$0xff] 0.0
      %390 = vst [vmem:[#allocation3 + $0x20] sm:$0xff] 0.0
      %391 = vst.msk [vmem:[#allocation3 + $0x28] sm:$0xff] %vm387, 0.0
      %392 = vst [vmem:[#allocation3 + $0x30] sm:$0xff] 0.0
      %393 = vst [vmem:[#allocation3 + $0x38] sm:$0xff] 0.0
      %394 = vst.msk [vmem:[#allocation3 + $0x40] sm:$0xff] %vm387, 0.0
      %395 = vst [vmem:[#allocation3 + $0x48] sm:$0xff] 0.0
      %396 = vst [vmem:[#allocation3 + $0x50] sm:$0xff] 0.0
      %397 = vst.msk [vmem:[#allocation3 + $0x58] sm:$0xff] %vm387, 0.0
      %398 = vst [vmem:[#allocation3 + $0x60] sm:$0xff] 0.0
      %399 = vst [vmem:[#allocation3 + $0x68] sm:$0xff] 0.0
      %400 = vst.msk [vmem:[#allocation3 + $0x70] sm:$0xff] %vm387, 0.0
      %401 = vst [vmem:[#allocation3 + $0x78] sm:$0xff] 0.0
      %402 = vst [vmem:[#allocation3 + $0x80] sm:$0xff] 0.0
      %403 = vst.msk [vmem:[#allocation3 + $0x88] sm:$0xff] %vm387, 0.0
      %404 = vst [vmem:[#allocation3 + $0x90] sm:$0xff] 0.0
      %405 = vst [vmem:[#allocation3 + $0x98] sm:$0xff] 0.0
      %406 = vst.msk [vmem:[#allocation3 + $0xa0] sm:$0xff] %vm387, 0.0
      %407 = vst [vmem:[#allocation3 + $0xa8] sm:$0xff] 0.0
      %408 = vst [vmem:[#allocation3 + $0xb0] sm:$0xff] 0.0
      %409 = vst.msk [vmem:[#allocation3 + $0xb8] sm:$0xff] %vm387, 0.0
      %410 = vst [vmem:[#allocation3 + $0xc0] sm:$0xff] 0.0
      %411 = vst [vmem:[#allocation3 + $0xc8] sm:$0xff] 0.0
      %412 = vst.msk [vmem:[#allocation3 + $0xd0] sm:$0xff] %vm387, 0.0
      %413 = vst [vmem:[#allocation3 + $0xd8] sm:$0xff] 0.0
      %414 = vst [vmem:[#allocation3 + $0xe0] sm:$0xff] 0.0
      %415 = vst.msk [vmem:[#allocation3 + $0xe8] sm:$0xff] %vm387, 0.0
      %416 = vst [vmem:[#allocation3 + $0xf0] sm:$0xff] 0.0
      %417 = vst [vmem:[#allocation3 + $0xf8] sm:$0xff] 0.0
      %418 = vst.msk [vmem:[#allocation3 + $0x100] sm:$0xff] %vm387, 0.0
      %419 = vst [vmem:[#allocation3 + $0x108] sm:$0xff] 0.0
      %420 = vst [vmem:[#allocation3 + $0x110] sm:$0xff] 0.0
      %421 = vst.msk [vmem:[#allocation3 + $0x118] sm:$0xff] %vm387, 0.0
      %422 = vst [vmem:[#allocation3 + $0x120] sm:$0xff] 0.0
      %423 = vst [vmem:[#allocation3 + $0x128] sm:$0xff] 0.0
      %424 = vst.msk [vmem:[#allocation3 + $0x130] sm:$0xff] %vm387, 0.0
      %425 = vst [vmem:[#allocation3 + $0x138] sm:$0xff] 0.0
      %426 = vst [vmem:[#allocation3 + $0x140] sm:$0xff] 0.0
      %427 = vst.msk [vmem:[#allocation3 + $0x148] sm:$0xff] %vm387, 0.0
      %428 = vst [vmem:[#allocation3 + $0x150] sm:$0xff] 0.0
      %429 = vst [vmem:[#allocation3 + $0x158] sm:$0xff] 0.0
      %430 = vst.msk [vmem:[#allocation3 + $0x160] sm:$0xff] %vm387, 0.0
      %431 = vst [vmem:[#allocation3 + $0x168] sm:$0xff] 0.0
      %432 = vst [vmem:[#allocation3 + $0x170] sm:$0xff] 0.0
      %433 = vst.msk [vmem:[#allocation3 + $0x178] sm:$0xff] %vm387, 0.0
      %434 = vst [vmem:[#allocation3 + $0x180] sm:$0xff] 0.0
      %435 = vst [vmem:[#allocation3 + $0x188] sm:$0xff] 0.0
      %436 = vst.msk [vmem:[#allocation3 + $0x190] sm:$0xff] %vm387, 0.0
      %437 = vst [vmem:[#allocation3 + $0x198] sm:$0xff] 0.0
      %438 = vst [vmem:[#allocation3 + $0x1a0] sm:$0xff] 0.0
      %439 = vst.msk [vmem:[#allocation3 + $0x1a8] sm:$0xff] %vm387, 0.0
      %v440 = vld [vmem:[%s1] sm:$0x7]
      %v441 = vld [vmem:[#allocation2] sm:$0xf]
      %v442 = vld [vmem:[#allocation2 + $0x8] sm:$0xf]
      %v443 = vld [vmem:[#allocation2 + $0x10] sm:$0xf]
      %444 = vst [vmem:[#allocation3] sm:$0xf] %v441
      %445 = vst [vmem:[#allocation3 + $0x8] sm:$0xf] %v442
      %vm446 = vcmask 240640
      %447 = vst.msk [vmem:[#allocation3 + $0x10] sm:$0xf] %vm446, %v443
      %v448 = vld [vmem:[#allocation2] sm:$0xf]
      %v449 = vld [vmem:[#allocation2 + $0x8] sm:$0xf]
      %v450 = vld [vmem:[#allocation2 + $0x10] sm:$0xf]
      %454 = vrot.lane.b32.xlu0 %v448, 127
      %v455 = vpop.permute.xlu0 %454
      %456 = vrot.lane.b32.xlu0 %v449, 127
      %v457 = vpop.permute.xlu0 %456
      %458 = vrot.lane.b32.xlu0 %v450, 127
      %v459 = vpop.permute.xlu0 %458
      %vm460 = vcmask 1039360
      %v461 = vsel %vm460, %v455, %v457
      %v462 = vsel %vm460, %v457, %v459
      %466 = vst [vmem:[#allocation3 + $0x30] sm:$0xf] %v461
      %467 = vst [vmem:[#allocation3 + $0x38] sm:$0xf] %v462
      %468 = vst.msk [vmem:[#allocation3 + $0x40] sm:$0xf] %vm446, %v459
      %v469 = vld [vmem:[#allocation2] sm:$0xf]
      %v470 = vld [vmem:[#allocation2 + $0x8] sm:$0xf]
      %v471 = vld [vmem:[#allocation2 + $0x10] sm:$0xf]
      %475 = vrot.lane.b32.xlu0 %v469, 126
      %v476 = vpop.permute.xlu0 %475
      %477 = vrot.lane.b32.xlu0 %v470, 126
      %v478 = vpop.permute.xlu0 %477
      %479 = vrot.lane.b32.xlu0 %v471, 126
      %v480 = vpop.permute.xlu0 %479
      %vm481 = vcmask 1031168
      %v482 = vsel %vm481, %v476, %v478
      %v483 = vsel %vm481, %v478, %v480
      %487 = vst [vmem:[#allocation3 + $0x60] sm:$0xf] %v482
      %488 = vst [vmem:[#allocation3 + $0x68] sm:$0xf] %v483
      %489 = vst.msk [vmem:[#allocation3 + $0x70] sm:$0xf] %vm446, %v480
      %v490 = vld [vmem:[#allocation2] sm:$0xf]
      %v491 = vld [vmem:[#allocation2 + $0x8] sm:$0xf]
      %v492 = vld [vmem:[#allocation2 + $0x10] sm:$0xf]
      %496 = vrot.lane.b32.xlu0 %v490, 110
      %v497 = vpop.permute.xlu0 %496
      %498 = vrot.lane.b32.xlu0 %v491, 110
      %v499 = vpop.permute.xlu0 %498
      %500 = vrot.lane.b32.xlu0 %v492, 110
      %v501 = vpop.permute.xlu0 %500
      %vm502 = vcmask 900096
      %v503 = vsel %vm502, %v497, %v499
      %v504 = vsel %vm502, %v499, %v501
      %508 = vst [vmem:[#allocation3 + $0x90] sm:$0xf] %v503
      %509 = vst [vmem:[#allocation3 + $0x98] sm:$0xf] %v504
      %510 = vst.msk [vmem:[#allocation3 + $0xa0] sm:$0xf] %vm446, %v501
      %v511 = vld [vmem:[#allocation2] sm:$0xf]
      %v512 = vld [vmem:[#allocation2 + $0x8] sm:$0xf]
      %v513 = vld [vmem:[#allocation2 + $0x10] sm:$0xf]
      %517 = vrot.lane.b32.xlu0 %v511, 109
      %v518 = vpop.permute.xlu0 %517
      %519 = vrot.lane.b32.xlu0 %v512, 109
      %v520 = vpop.permute.xlu0 %519
      %521 = vrot.lane.b32.xlu0 %v513, 109
      %v522 = vpop.permute.xlu0 %521
      %vm523 = vcmask 891904
      %v524 = vsel %vm523, %v518, %v520
      %v525 = vsel %vm523, %v520, %v522
      %529 = vst [vmem:[#allocation3 + $0xc0] sm:$0xf] %v524
      %530 = vst [vmem:[#allocation3 + $0xc8] sm:$0xf] %v525
      %531 = vst.msk [vmem:[#allocation3 + $0xd0] sm:$0xf] %vm446, %v522
      %v532 = vld [vmem:[#allocation2] sm:$0xf]
      %v533 = vld [vmem:[#allocation2 + $0x8] sm:$0xf]
      %v534 = vld [vmem:[#allocation2 + $0x10] sm:$0xf]
      %538 = vrot.lane.b32.xlu0 %v532, 108
      %v539 = vpop.permute.xlu0 %538
      %540 = vrot.lane.b32.xlu0 %v533, 108
      %v541 = vpop.permute.xlu0 %540
      %542 = vrot.lane.b32.xlu0 %v534, 108
      %v543 = vpop.permute.xlu0 %542
      %vm544 = vcmask 883712
      %v545 = vsel %vm544, %v539, %v541
      %v546 = vsel %vm544, %v541, %v543
      %550 = vst [vmem:[#allocation3 + $0xf0] sm:$0xf] %v545
      %551 = vst [vmem:[#allocation3 + $0xf8] sm:$0xf] %v546
      %552 = vst.msk [vmem:[#allocation3 + $0x100] sm:$0xf] %vm446, %v543
      %v553 = vld [vmem:[#allocation2] sm:$0xf]
      %v554 = vld [vmem:[#allocation2 + $0x8] sm:$0xf]
      %v555 = vld [vmem:[#allocation2 + $0x10] sm:$0xf]
      %559 = vrot.lane.b32.xlu0 %v553, 92
      %v560 = vpop.permute.xlu0 %559
      %561 = vrot.lane.b32.xlu0 %v554, 92
      %v562 = vpop.permute.xlu0 %561
      %563 = vrot.lane.b32.xlu0 %v555, 92
      %v564 = vpop.permute.xlu0 %563
      %vm565 = vcmask 752640
      %v566 = vsel %vm565, %v560, %v562
      %v567 = vsel %vm565, %v562, %v564
      %571 = vst [vmem:[#allocation3 + $0x120] sm:$0xf] %v566
      %572 = vst [vmem:[#allocation3 + $0x128] sm:$0xf] %v567
      %573 = vst.msk [vmem:[#allocation3 + $0x130] sm:$0xf] %vm446, %v564
      %v574 = vld [vmem:[#allocation2] sm:$0xf]
      %v575 = vld [vmem:[#allocation2 + $0x8] sm:$0xf]
      %v576 = vld [vmem:[#allocation2 + $0x10] sm:$0xf]
      %580 = vrot.lane.b32.xlu0 %v574, 91
      %v581 = vpop.permute.xlu0 %580
      %582 = vrot.lane.b32.xlu0 %v575, 91
      %v583 = vpop.permute.xlu0 %582
      %584 = vrot.lane.b32.xlu0 %v576, 91
      %v585 = vpop.permute.xlu0 %584
      %vm586 = vcmask 744448
      %v587 = vsel %vm586, %v581, %v583
      %v588 = vsel %vm586, %v583, %v585
      %592 = vst [vmem:[#allocation3 + $0x150] sm:$0xf] %v587
      %593 = vst [vmem:[#allocation3 + $0x158] sm:$0xf] %v588
      %594 = vst.msk [vmem:[#allocation3 + $0x160] sm:$0xf] %vm446, %v585
      %v595 = vld [vmem:[#allocation2] sm:$0xf]
      %v596 = vld [vmem:[#allocation2 + $0x8] sm:$0xf]
      %v597 = vld [vmem:[#allocation2 + $0x10] sm:$0xf]
      %601 = vrot.lane.b32.xlu0 %v595, 90
      %v602 = vpop.permute.xlu0 %601
      %603 = vrot.lane.b32.xlu0 %v596, 90
      %v604 = vpop.permute.xlu0 %603
      %605 = vrot.lane.b32.xlu0 %v597, 90
      %v606 = vpop.permute.xlu0 %605
      %vm607 = vcmask 736256
      %v608 = vsel %vm607, %v602, %v604
      %v609 = vsel %vm607, %v604, %v606
      %613 = vst [vmem:[#allocation3 + $0x180] sm:$0xf] %v608
      %614 = vst [vmem:[#allocation3 + $0x188] sm:$0xf] %v609
      %615 = vst.msk [vmem:[#allocation3 + $0x190] sm:$0xf] %vm446, %v606
      %v616 = vld [vmem:[%s2] sm:$0xff]
      %v617 = vld [vmem:[#allocation3] sm:$0xff]
      %v618 = vld [vmem:[#allocation3 + $0x8] sm:$0xff]
      %v619 = vld [vmem:[#allocation3 + $0x10] sm:$0xff]
      %v620 = vld [vmem:[#allocation3 + $0x18] sm:$0xff]
      %v621 = vld [vmem:[#allocation3 + $0x20] sm:$0xff]
      %v622 = vld [vmem:[#allocation3 + $0x28] sm:$0xff]
      %v623 = vld [vmem:[#allocation3 + $0x30] sm:$0xff]
      %v624 = vld [vmem:[#allocation3 + $0x38] sm:$0xff]
      %v625 = vld [vmem:[#allocation3 + $0x40] sm:$0xff]
      %v626 = vld [vmem:[#allocation3 + $0x48] sm:$0xff]
      %v627 = vld [vmem:[#allocation3 + $0x50] sm:$0xff]
      %v628 = vld [vmem:[#allocation3 + $0x58] sm:$0xff]
      %v629 = vld [vmem:[#allocation3 + $0x60] sm:$0xff]
      %v630 = vld [vmem:[#allocation3 + $0x68] sm:$0xff]
      %v631 = vld [vmem:[#allocation3 + $0x70] sm:$0xff]
      %v632 = vld [vmem:[#allocation3 + $0x78] sm:$0xff]
      %v633 = vld [vmem:[#allocation3 + $0x80] sm:$0xff]
      %v634 = vld [vmem:[#allocation3 + $0x88] sm:$0xff]
      %v635 = vld [vmem:[#allocation3 + $0x90] sm:$0xff]
      %v636 = vld [vmem:[#allocation3 + $0x98] sm:$0xff]
      %v637 = vld [vmem:[#allocation3 + $0xa0] sm:$0xff]
      %v638 = vld [vmem:[#allocation3 + $0xa8] sm:$0xff]
      %v639 = vld [vmem:[#allocation3 + $0xb0] sm:$0xff]
      %v640 = vld [vmem:[#allocation3 + $0xb8] sm:$0xff]
      %v641 = vld [vmem:[#allocation3 + $0xc0] sm:$0xff]
      %v642 = vld [vmem:[#allocation3 + $0xc8] sm:$0xff]
      %v643 = vld [vmem:[#allocation3 + $0xd0] sm:$0xff]
      %v644 = vld [vmem:[#allocation3 + $0xd8] sm:$0xff]
      %v645 = vld [vmem:[#allocation3 + $0xe0] sm:$0xff]
      %v646 = vld [vmem:[#allocation3 + $0xe8] sm:$0xff]
      %v647 = vld [vmem:[#allocation3 + $0xf0] sm:$0xff]
      %v648 = vld [vmem:[#allocation3 + $0xf8] sm:$0xff]
      %v649 = vld [vmem:[#allocation3 + $0x100] sm:$0xff]
      %v650 = vld [vmem:[#allocation3 + $0x108] sm:$0xff]
      %v651 = vld [vmem:[#allocation3 + $0x110] sm:$0xff]
      %v652 = vld [vmem:[#allocation3 + $0x118] sm:$0xff]
      %v653 = vld [vmem:[#allocation3 + $0x120] sm:$0xff]
      %v654 = vld [vmem:[#allocation3 + $0x128] sm:$0xff]
      %v655 = vld [vmem:[#allocation3 + $0x130] sm:$0xff]
      %v656 = vld [vmem:[#allocation3 + $0x138] sm:$0xff]
      %v657 = vld [vmem:[#allocation3 + $0x140] sm:$0xff]
      %v658 = vld [vmem:[#allocation3 + $0x148] sm:$0xff]
      %v659 = vld [vmem:[#allocation3 + $0x150] sm:$0xff]
      %v660 = vld [vmem:[#allocation3 + $0x158] sm:$0xff]
      %v661 = vld [vmem:[#allocation3 + $0x160] sm:$0xff]
      %v662 = vld [vmem:[#allocation3 + $0x168] sm:$0xff]
      %v663 = vld [vmem:[#allocation3 + $0x170] sm:$0xff]
      %v664 = vld [vmem:[#allocation3 + $0x178] sm:$0xff]
      %v665 = vld [vmem:[#allocation3 + $0x180] sm:$0xff]
      %v666 = vld [vmem:[#allocation3 + $0x188] sm:$0xff]
      %v667 = vld [vmem:[#allocation3 + $0x190] sm:$0xff]
      %v668 = vld [vmem:[#allocation3 + $0x198] sm:$0xff]
      %v669 = vld [vmem:[#allocation3 + $0x1a0] sm:$0xff]
      %v670 = vld [vmem:[#allocation3 + $0x1a8] sm:$0xff]
      %v671 = vld [vmem:[%s3] sm:$0xf]
      %673 = vset.pattern.permute.xlu0 0
      %674 = vperm.xlu0 %673, %v671
      %v675 = vpop.permute.xlu0 %674
      %678 = vst [vmem:[#allocation1] ss:$2 sm:$0xff] %v616
      %v679 = vld.sshfl [vmem:[#allocation1] sm:$0xff pattern:$0x75316420]
      %v680 = vld.sshfl [vmem:[#allocation1 + $0x8] sm:$0xff pattern:$0x75316420]
      %vm682 = vcmask 130048
      %v683 = vsel %vm682, %v680, 0
      %685 = vmatpush.msra.mxu0 %v662
      %686 = vmatpush.msra.mxu0 %v659
      %687 = vmatpush.msra.mxu0 %v656
      %688 = vmatpush.msra.mxu0 %v653
      %689 = vmatpush.msra.mxu0 %v650
      %690 = vmatpush.msra.mxu0 %v647
      %691 = vmatpush.msra.mxu0 %v644
      %692 = vmatpush.msra.mxu0 %v641
      %693 = vmatpush.msra.mxu0 %v638
      %694 = vmatpush.msra.mxu0 %v635
      %695 = vmatpush.msra.mxu0 %v632
      %696 = vmatpush.msra.mxu0 %v629
      %697 = vmatpush.msra.mxu0 %v626
      %698 = vmatpush.msra.mxu0 %v623
      %699 = vmatpush.msra.mxu0 %v620
      %700 = vmatpush.msra.mxu0 %v617
      %701 = vmatmul.f32.gmra.mxu0 %v679
      %v702 = vpop.f32.mrf.mxu0
      %v703 = vadd.f32 %v675, %v702
      %704 = vdwg.mxu0
      %705 = vmatpush.msra.mxu0 0.0
      %706 = vmatpush.msra.mxu0 0.0
      %707 = vmatpush.msra.mxu0 0.0
      %708 = vmatpush.msra.mxu0 0.0
      %709 = vmatpush.msra.mxu0 0.0
      %710 = vmatpush.msra.mxu0 0.0
      %711 = vmatpush.msra.mxu0 0.0
      %712 = vmatpush.msra.mxu0 0.0
      %713 = vmatpush.msra.mxu0 0.0
      %714 = vmatpush.msra.mxu0 0.0
      %715 = vmatpush.msra.mxu0 0.0
      %716 = vmatpush.msra.mxu0 0.0
      %717 = vmatpush.msra.mxu0 0.0
      %718 = vmatpush.msra.mxu0 0.0
      %719 = vmatpush.msra.mxu0 %v668
      %720 = vmatpush.msra.mxu0 %v665
      %721 = vmatmul.f32.gmra.mxu0 %v683
      %v722 = vpop.f32.mrf.mxu0
      %v723 = vadd.f32 %v703, %v722
      %724 = vdwg.mxu0
      %725 = vmatpush.msra.mxu0 %v663
      %726 = vmatpush.msra.mxu0 %v660
      %727 = vmatpush.msra.mxu0 %v657
      %728 = vmatpush.msra.mxu0 %v654
      %729 = vmatpush.msra.mxu0 %v651
      %730 = vmatpush.msra.mxu0 %v648
      %731 = vmatpush.msra.mxu0 %v645
      %732 = vmatpush.msra.mxu0 %v642
      %733 = vmatpush.msra.mxu0 %v639
      %734 = vmatpush.msra.mxu0 %v636
      %735 = vmatpush.msra.mxu0 %v633
      %736 = vmatpush.msra.mxu0 %v630
      %737 = vmatpush.msra.mxu0 %v627
      %738 = vmatpush.msra.mxu0 %v624
      %739 = vmatpush.msra.mxu0 %v621
      %740 = vmatpush.msra.mxu0 %v618
      %741 = vmatmul.f32.gmra.mxu0 %v679
      %v742 = vpop.f32.mrf.mxu0
      %v743 = vadd.f32 %v675, %v742
      %744 = vdwg.mxu0
      %745 = vmatpush.msra.mxu0 0.0
      %746 = vmatpush.msra.mxu0 0.0
      %747 = vmatpush.msra.mxu0 0.0
      %748 = vmatpush.msra.mxu0 0.0
      %749 = vmatpush.msra.mxu0 0.0
      %750 = vmatpush.msra.mxu0 0.0
      %751 = vmatpush.msra.mxu0 0.0
      %752 = vmatpush.msra.mxu0 0.0
      %753 = vmatpush.msra.mxu0 0.0
      %754 = vmatpush.msra.mxu0 0.0
      %755 = vmatpush.msra.mxu0 0.0
      %756 = vmatpush.msra.mxu0 0.0
      %757 = vmatpush.msra.mxu0 0.0
      %758 = vmatpush.msra.mxu0 0.0
      %759 = vmatpush.msra.mxu0 %v669
      %760 = vmatpush.msra.mxu0 %v666
      %761 = vmatmul.f32.gmra.mxu0 %v683
      %v762 = vpop.f32.mrf.mxu0
      %v763 = vadd.f32 %v743, %v762
      %764 = vdwg.mxu0
      %765 = vmatpush.msra.mxu0 %v664
      %766 = vmatpush.msra.mxu0 %v661
      %767 = vmatpush.msra.mxu0 %v658
      %768 = vmatpush.msra.mxu0 %v655
      %769 = vmatpush.msra.mxu0 %v652
      %770 = vmatpush.msra.mxu0 %v649
      %771 = vmatpush.msra.mxu0 %v646
      %772 = vmatpush.msra.mxu0 %v643
      %773 = vmatpush.msra.mxu0 %v640
      %774 = vmatpush.msra.mxu0 %v637
      %775 = vmatpush.msra.mxu0 %v634
      %776 = vmatpush.msra.mxu0 %v631
      %777 = vmatpush.msra.mxu0 %v628
      %778 = vmatpush.msra.mxu0 %v625
      %779 = vmatpush.msra.mxu0 %v622
      %780 = vmatpush.msra.mxu0 %v619
      %781 = vmatmul.f32.gmra.mxu0 %v679
      %v782 = vpop.f32.mrf.mxu0
      %v783 = vadd.f32 %v675, %v782
      %784 = vdwg.mxu0
      %785 = vmatpush.msra.mxu0 0.0
      %786 = vmatpush.msra.mxu0 0.0
      %787 = vmatpush.msra.mxu0 0.0
      %788 = vmatpush.msra.mxu0 0.0
      %789 = vmatpush.msra.mxu0 0.0
      %790 = vmatpush.msra.mxu0 0.0
      %791 = vmatpush.msra.mxu0 0.0
      %792 = vmatpush.msra.mxu0 0.0
      %793 = vmatpush.msra.mxu0 0.0
      %794 = vmatpush.msra.mxu0 0.0
      %795 = vmatpush.msra.mxu0 0.0
      %796 = vmatpush.msra.mxu0 0.0
      %797 = vmatpush.msra.mxu0 0.0
      %798 = vmatpush.msra.mxu0 0.0
      %799 = vmatpush.msra.mxu0 %v670
      %800 = vmatpush.msra.mxu0 %v667
      %801 = vmatmul.f32.gmra.mxu0 %v683
      %v802 = vpop.f32.mrf.mxu0
      %v803 = vadd.f32 %v783, %v802
      %804 = vdwg.mxu0
      %v805 = vmax.f32 %v723, 0.0
      %v806 = vmax.f32 %v763, 0.0
      %v807 = vmax.f32 %v803, 0.0
      %v809 = vperm.slane %v440, 0
      %v810 = vperm.slane %v440, 1
      %v811 = vperm.slane %v440, 2
      %v815 = vmul.f32 %v805, %v809
      %v816 = vmul.f32 %v806, %v810
      %v817 = vmul.f32 %v807, %v811
      %v821 = vrot.slane %v815, 4
      %v822 = vrot.slane %v816, 4
      %v823 = vrot.slane %v817, 4
      %824 = vrot.lane.b32.xlu0 %v821, 19
      %v825 = vpop.permute.xlu0 %824
      %826 = vrot.lane.b32.xlu0 %v822, 19
      %v827 = vpop.permute.xlu0 %826
      %828 = vrot.lane.b32.xlu0 %v823, 19
      %v829 = vpop.permute.xlu0 %828
      %vm830 = vcmask 154624
      %v831 = vsel %vm830, %v825, %v827
      %v832 = vsel %vm830, %v827, %v829
      %vm836 = vcmask 1047708
      %837 = vst.msk [vmem:[#allocation2] sm:$0xf0] %vm836, %v825
      %838 = vst [vmem:[#allocation2 + $0x8] sm:$0xf0] %v831
      %vm839 = vcmask 400388
      %840 = vst.msk [vmem:[#allocation2 + $0x10] sm:$0xf0] %vm839, %v832
      %v841 = vld [vmem:[#allocation2] sm:$0xff]
      %v842 = vld [vmem:[#allocation2 + $0x8] sm:$0xff]
      %v843 = vld [vmem:[#allocation2 + $0x10] sm:$0xff]
      %844 = vst [vmem:[#allocation3] sm:$0xff] %v841
      %845 = vst [vmem:[#allocation3 + $0x8] sm:$0xff] %v842
      %846 = vst.msk [vmem:[#allocation3 + $0x10] sm:$0xff] %vm387, %v843
      %v847 = vld [vmem:[#allocation2] sm:$0xff]
      %v848 = vld [vmem:[#allocation2 + $0x8] sm:$0xff]
      %v849 = vld [vmem:[#allocation2 + $0x10] sm:$0xff]
      %853 = vrot.lane.b32.xlu0 %v847, 127
      %v854 = vpop.permute.xlu0 %853
      %855 = vrot.lane.b32.xlu0 %v848, 127
      %v856 = vpop.permute.xlu0 %855
      %857 = vrot.lane.b32.xlu0 %v849, 127
      %v858 = vpop.permute.xlu0 %857
      %v859 = vsel %vm460, %v854, %v856
      %v860 = vsel %vm460, %v856, %v858
      %864 = vst [vmem:[#allocation3 + $0x30] sm:$0xff] %v859
      %865 = vst [vmem:[#allocation3 + $0x38] sm:$0xff] %v860
      %866 = vst.msk [vmem:[#allocation3 + $0x40] sm:$0xff] %vm387, %v858
      %v867 = vld [vmem:[#allocation2] sm:$0xff]
      %v868 = vld [vmem:[#allocation2 + $0x8] sm:$0xff]
      %v869 = vld [vmem:[#allocation2 + $0x10] sm:$0xff]
      %873 = vrot.lane.b32.xlu0 %v867, 126
      %v874 = vpop.permute.xlu0 %873
      %875 = vrot.lane.b32.xlu0 %v868, 126
      %v876 = vpop.permute.xlu0 %875
      %877 = vrot.lane.b32.xlu0 %v869, 126
      %v878 = vpop.permute.xlu0 %877
      %v879 = vsel %vm481, %v874, %v876
      %v880 = vsel %vm481, %v876, %v878
      %884 = vst [vmem:[#allocation3 + $0x60] sm:$0xff] %v879
      %885 = vst [vmem:[#allocation3 + $0x68] sm:$0xff] %v880
      %886 = vst.msk [vmem:[#allocation3 + $0x70] sm:$0xff] %vm387, %v878
      %v887 = vld [vmem:[#allocation2] sm:$0xff]
      %v888 = vld [vmem:[#allocation2 + $0x8] sm:$0xff]
      %v889 = vld [vmem:[#allocation2 + $0x10] sm:$0xff]
      %893 = vrot.lane.b32.xlu0 %v887, 110
      %v894 = vpop.permute.xlu0 %893
      %895 = vrot.lane.b32.xlu0 %v888, 110
      %v896 = vpop.permute.xlu0 %895
      %897 = vrot.lane.b32.xlu0 %v889, 110
      %v898 = vpop.permute.xlu0 %897
      %v899 = vsel %vm502, %v894, %v896
      %v900 = vsel %vm502, %v896, %v898
      %904 = vst [vmem:[#allocation3 + $0x90] sm:$0xff] %v899
      %905 = vst [vmem:[#allocation3 + $0x98] sm:$0xff] %v900
      %906 = vst.msk [vmem:[#allocation3 + $0xa0] sm:$0xff] %vm387, %v898
      %v907 = vld [vmem:[#allocation2] sm:$0xff]
      %v908 = vld [vmem:[#allocation2 + $0x8] sm:$0xff]
      %v909 = vld [vmem:[#allocation2 + $0x10] sm:$0xff]
      %913 = vrot.lane.b32.xlu0 %v907, 109
      %v914 = vpop.permute.xlu0 %913
      %915 = vrot.lane.b32.xlu0 %v908, 109
      %v916 = vpop.permute.xlu0 %915
      %917 = vrot.lane.b32.xlu0 %v909, 109
      %v918 = vpop.permute.xlu0 %917
      %v919 = vsel %vm523, %v914, %v916
      %v920 = vsel %vm523, %v916, %v918
      %924 = vst [vmem:[#allocation3 + $0xc0] sm:$0xff] %v919
      %925 = vst [vmem:[#allocation3 + $0xc8] sm:$0xff] %v920
      %926 = vst.msk [vmem:[#allocation3 + $0xd0] sm:$0xff] %vm387, %v918
      %v927 = vld [vmem:[#allocation2] sm:$0xff]
      %v928 = vld [vmem:[#allocation2 + $0x8] sm:$0xff]
      %v929 = vld [vmem:[#allocation2 + $0x10] sm:$0xff]
      %933 = vrot.lane.b32.xlu0 %v927, 108
      %v934 = vpop.permute.xlu0 %933
      %935 = vrot.lane.b32.xlu0 %v928, 108
      %v936 = vpop.permute.xlu0 %935
      %937 = vrot.lane.b32.xlu0 %v929, 108
      %v938 = vpop.permute.xlu0 %937
      %v939 = vsel %vm544, %v934, %v936
      %v940 = vsel %vm544, %v936, %v938
      %944 = vst [vmem:[#allocation3 + $0xf0] sm:$0xff] %v939
      %945 = vst [vmem:[#allocation3 + $0xf8] sm:$0xff] %v940
      %946 = vst.msk [vmem:[#allocation3 + $0x100] sm:$0xff] %vm387, %v938
      %v947 = vld [vmem:[#allocation2] sm:$0xff]
      %v948 = vld [vmem:[#allocation2 + $0x8] sm:$0xff]
      %v949 = vld [vmem:[#allocation2 + $0x10] sm:$0xff]
      %953 = vrot.lane.b32.xlu0 %v947, 92
      %v954 = vpop.permute.xlu0 %953
      %955 = vrot.lane.b32.xlu0 %v948, 92
      %v956 = vpop.permute.xlu0 %955
      %957 = vrot.lane.b32.xlu0 %v949, 92
      %v958 = vpop.permute.xlu0 %957
      %v959 = vsel %vm565, %v954, %v956
      %v960 = vsel %vm565, %v956, %v958
      %964 = vst [vmem:[#allocation3 + $0x120] sm:$0xff] %v959
      %965 = vst [vmem:[#allocation3 + $0x128] sm:$0xff] %v960
      %966 = vst.msk [vmem:[#allocation3 + $0x130] sm:$0xff] %vm387, %v958
      %v967 = vld [vmem:[#allocation2] sm:$0xff]
      %v968 = vld [vmem:[#allocation2 + $0x8] sm:$0xff]
      %v969 = vld [vmem:[#allocation2 + $0x10] sm:$0xff]
      %973 = vrot.lane.b32.xlu0 %v967, 91
      %v974 = vpop.permute.xlu0 %973
      %975 = vrot.lane.b32.xlu0 %v968, 91
      %v976 = vpop.permute.xlu0 %975
      %977 = vrot.lane.b32.xlu0 %v969, 91
      %v978 = vpop.permute.xlu0 %977
      %v979 = vsel %vm586, %v974, %v976
      %v980 = vsel %vm586, %v976, %v978
      %984 = vst [vmem:[#allocation3 + $0x150] sm:$0xff] %v979
      %985 = vst [vmem:[#allocation3 + $0x158] sm:$0xff] %v980
      %986 = vst.msk [vmem:[#allocation3 + $0x160] sm:$0xff] %vm387, %v978
      %v987 = vld [vmem:[#allocation2] sm:$0xff]
      %v988 = vld [vmem:[#allocation2 + $0x8] sm:$0xff]
      %v989 = vld [vmem:[#allocation2 + $0x10] sm:$0xff]
      %993 = vrot.lane.b32.xlu0 %v987, 90
      %v994 = vpop.permute.xlu0 %993
      %995 = vrot.lane.b32.xlu0 %v988, 90
      %v996 = vpop.permute.xlu0 %995
      %997 = vrot.lane.b32.xlu0 %v989, 90
      %v998 = vpop.permute.xlu0 %997
      %v999 = vsel %vm607, %v994, %v996
      %v1000 = vsel %vm607, %v996, %v998
      %1004 = vst [vmem:[#allocation3 + $0x180] sm:$0xff] %v999
      %1005 = vst [vmem:[#allocation3 + $0x188] sm:$0xff] %v1000
      %1006 = vst.msk [vmem:[#allocation3 + $0x190] sm:$0xff] %vm387, %v998
      %v1007 = vld [vmem:[%s4] sm:$0xff]
      %v1008 = vld [vmem:[#allocation3] sm:$0xff]
      %v1009 = vld [vmem:[#allocation3 + $0x8] sm:$0xff]
      %v1010 = vld [vmem:[#allocation3 + $0x10] sm:$0xff]
      %v1011 = vld [vmem:[#allocation3 + $0x18] sm:$0xff]
      %v1012 = vld [vmem:[#allocation3 + $0x20] sm:$0xff]
      %v1013 = vld [vmem:[#allocation3 + $0x28] sm:$0xff]
      %v1014 = vld [vmem:[#allocation3 + $0x30] sm:$0xff]
      %v1015 = vld [vmem:[#allocation3 + $0x38] sm:$0xff]
      %v1016 = vld [vmem:[#allocation3 + $0x40] sm:$0xff]
      %v1017 = vld [vmem:[#allocation3 + $0x48] sm:$0xff]
      %v1018 = vld [vmem:[#allocation3 + $0x50] sm:$0xff]
      %v1019 = vld [vmem:[#allocation3 + $0x58] sm:$0xff]
      %v1020 = vld [vmem:[#allocation3 + $0x60] sm:$0xff]
      %v1021 = vld [vmem:[#allocation3 + $0x68] sm:$0xff]
      %v1022 = vld [vmem:[#allocation3 + $0x70] sm:$0xff]
      %v1023 = vld [vmem:[#allocation3 + $0x78] sm:$0xff]
      %v1024 = vld [vmem:[#allocation3 + $0x80] sm:$0xff]
      %v1025 = vld [vmem:[#allocation3 + $0x88] sm:$0xff]
      %v1026 = vld [vmem:[#allocation3 + $0x90] sm:$0xff]
      %v1027 = vld [vmem:[#allocation3 + $0x98] sm:$0xff]
      %v1028 = vld [vmem:[#allocation3 + $0xa0] sm:$0xff]
      %v1029 = vld [vmem:[#allocation3 + $0xa8] sm:$0xff]
      %v1030 = vld [vmem:[#allocation3 + $0xb0] sm:$0xff]
      %v1031 = vld [vmem:[#allocation3 + $0xb8] sm:$0xff]
      %v1032 = vld [vmem:[#allocation3 + $0xc0] sm:$0xff]
      %v1033 = vld [vmem:[#allocation3 + $0xc8] sm:$0xff]
      %v1034 = vld [vmem:[#allocation3 + $0xd0] sm:$0xff]
      %v1035 = vld [vmem:[#allocation3 + $0xd8] sm:$0xff]
      %v1036 = vld [vmem:[#allocation3 + $0xe0] sm:$0xff]
      %v1037 = vld [vmem:[#allocation3 + $0xe8] sm:$0xff]
      %v1038 = vld [vmem:[#allocation3 + $0xf0] sm:$0xff]
      %v1039 = vld [vmem:[#allocation3 + $0xf8] sm:$0xff]
      %v1040 = vld [vmem:[#allocation3 + $0x100] sm:$0xff]
      %v1041 = vld [vmem:[#allocation3 + $0x108] sm:$0xff]
      %v1042 = vld [vmem:[#allocation3 + $0x110] sm:$0xff]
      %v1043 = vld [vmem:[#allocation3 + $0x118] sm:$0xff]
      %v1044 = vld [vmem:[#allocation3 + $0x120] sm:$0xff]
      %v1045 = vld [vmem:[#allocation3 + $0x128] sm:$0xff]
      %v1046 = vld [vmem:[#allocation3 + $0x130] sm:$0xff]
      %v1047 = vld [vmem:[#allocation3 + $0x138] sm:$0xff]
      %v1048 = vld [vmem:[#allocation3 + $0x140] sm:$0xff]
      %v1049 = vld [vmem:[#allocation3 + $0x148] sm:$0xff]
      %v1050 = vld [vmem:[#allocation3 + $0x150] sm:$0xff]
      %v1051 = vld [vmem:[#allocation3 + $0x158] sm:$0xff]
      %v1052 = vld [vmem:[#allocation3 + $0x160] sm:$0xff]
      %v1053 = vld [vmem:[#allocation3 + $0x168] sm:$0xff]
      %v1054 = vld [vmem:[#allocation3 + $0x170] sm:$0xff]
      %v1055 = vld [vmem:[#allocation3 + $0x178] sm:$0xff]
      %v1056 = vld [vmem:[#allocation3 + $0x180] sm:$0xff]
      %v1057 = vld [vmem:[#allocation3 + $0x188] sm:$0xff]
      %v1058 = vld [vmem:[#allocation3 + $0x190] sm:$0xff]
      %v1059 = vld [vmem:[#allocation3 + $0x198] sm:$0xff]
      %v1060 = vld [vmem:[#allocation3 + $0x1a0] sm:$0xff]
      %v1061 = vld [vmem:[#allocation3 + $0x1a8] sm:$0xff]
      %v1062 = vld [vmem:[%s5] sm:$0xf]
      %1064 = vset.pattern.permute.xlu0 0
      %1065 = vperm.xlu0 %1064, %v1062
      %v1066 = vpop.permute.xlu0 %1065
      %1069 = vst [vmem:[#allocation1] ss:$2 sm:$0xff] %v1007
      %v1070 = vld.sshfl [vmem:[#allocation1] sm:$0xff pattern:$0x75316420]
      %v1071 = vld.sshfl [vmem:[#allocation1 + $0x8] sm:$0xff pattern:$0x75316420]
      %v1073 = vsel %vm682, %v1071, 0
      %1075 = vmatpush.msra.mxu0 %v1053
      %1076 = vmatpush.msra.mxu0 %v1050
      %1077 = vmatpush.msra.mxu0 %v1047
      %1078 = vmatpush.msra.mxu0 %v1044
      %1079 = vmatpush.msra.mxu0 %v1041
      %1080 = vmatpush.msra.mxu0 %v1038
      %1081 = vmatpush.msra.mxu0 %v1035
      %1082 = vmatpush.msra.mxu0 %v1032
      %1083 = vmatpush.msra.mxu0 %v1029
      %1084 = vmatpush.msra.mxu0 %v1026
      %1085 = vmatpush.msra.mxu0 %v1023
      %1086 = vmatpush.msra.mxu0 %v1020
      %1087 = vmatpush.msra.mxu0 %v1017
      %1088 = vmatpush.msra.mxu0 %v1014
      %1089 = vmatpush.msra.mxu0 %v1011
      %1090 = vmatpush.msra.mxu0 %v1008
      %1091 = vmatmul.f32.gmra.mxu0 %v1070
      %v1092 = vpop.f32.mrf.mxu0
      %v1093 = vadd.f32 %v1066, %v1092
      %1094 = vdwg.mxu0
      %1095 = vmatpush.msra.mxu0 0.0
      %1096 = vmatpush.msra.mxu0 0.0
      %1097 = vmatpush.msra.mxu0 0.0
      %1098 = vmatpush.msra.mxu0 0.0
      %1099 = vmatpush.msra.mxu0 0.0
      %1100 = vmatpush.msra.mxu0 0.0
      %1101 = vmatpush.msra.mxu0 0.0
      %1102 = vmatpush.msra.mxu0 0.0
      %1103 = vmatpush.msra.mxu0 0.0
      %1104 = vmatpush.msra.mxu0 0.0
      %1105 = vmatpush.msra.mxu0 0.0
      %1106 = vmatpush.msra.mxu0 0.0
      %1107 = vmatpush.msra.mxu0 0.0
      %1108 = vmatpush.msra.mxu0 0.0
      %1109 = vmatpush.msra.mxu0 %v1059
      %1110 = vmatpush.msra.mxu0 %v1056
      %1111 = vmatmul.f32.gmra.mxu0 %v1073
      %v1112 = vpop.f32.mrf.mxu0
      %v1113 = vadd.f32 %v1093, %v1112
      %1114 = vdwg.mxu0
      %1115 = vmatpush.msra.mxu0 %v1054
      %1116 = vmatpush.msra.mxu0 %v1051
      %1117 = vmatpush.msra.mxu0 %v1048
      %1118 = vmatpush.msra.mxu0 %v1045
      %1119 = vmatpush.msra.mxu0 %v1042
      %1120 = vmatpush.msra.mxu0 %v1039
      %1121 = vmatpush.msra.mxu0 %v1036
      %1122 = vmatpush.msra.mxu0 %v1033
      %1123 = vmatpush.msra.mxu0 %v1030
      %1124 = vmatpush.msra.mxu0 %v1027
      %1125 = vmatpush.msra.mxu0 %v1024
      %1126 = vmatpush.msra.mxu0 %v1021
      %1127 = vmatpush.msra.mxu0 %v1018
      %1128 = vmatpush.msra.mxu0 %v1015
      %1129 = vmatpush.msra.mxu0 %v1012
      %1130 = vmatpush.msra.mxu0 %v1009
      %1131 = vmatmul.f32.gmra.mxu0 %v1070
      %v1132 = vpop.f32.mrf.mxu0
      %v1133 = vadd.f32 %v1066, %v1132
      %1134 = vdwg.mxu0
      %1135 = vmatpush.msra.mxu0 0.0
      %1136 = vmatpush.msra.mxu0 0.0
      %1137 = vmatpush.msra.mxu0 0.0
      %1138 = vmatpush.msra.mxu0 0.0
      %1139 = vmatpush.msra.mxu0 0.0
      %1140 = vmatpush.msra.mxu0 0.0
      %1141 = vmatpush.msra.mxu0 0.0
      %1142 = vmatpush.msra.mxu0 0.0
      %1143 = vmatpush.msra.mxu0 0.0
      %1144 = vmatpush.msra.mxu0 0.0
      %1145 = vmatpush.msra.mxu0 0.0
      %1146 = vmatpush.msra.mxu0 0.0
      %1147 = vmatpush.msra.mxu0 0.0
      %1148 = vmatpush.msra.mxu0 0.0
      %1149 = vmatpush.msra.mxu0 %v1060
      %1150 = vmatpush.msra.mxu0 %v1057
      %1151 = vmatmul.f32.gmra.mxu0 %v1073
      %v1152 = vpop.f32.mrf.mxu0
      %v1153 = vadd.f32 %v1133, %v1152
      %1154 = vdwg.mxu0
      %1155 = vmatpush.msra.mxu0 %v1055
      %1156 = vmatpush.msra.mxu0 %v1052
      %1157 = vmatpush.msra.mxu0 %v1049
      %1158 = vmatpush.msra.mxu0 %v1046
      %1159 = vmatpush.msra.mxu0 %v1043
      %1160 = vmatpush.msra.mxu0 %v1040
      %1161 = vmatpush.msra.mxu0 %v1037
      %1162 = vmatpush.msra.mxu0 %v1034
      %1163 = vmatpush.msra.mxu0 %v1031
      %1164 = vmatpush.msra.mxu0 %v1028
      %1165 = vmatpush.msra.mxu0 %v1025
      %1166 = vmatpush.msra.mxu0 %v1022
      %1167 = vmatpush.msra.mxu0 %v1019
      %1168 = vmatpush.msra.mxu0 %v1016
      %1169 = vmatpush.msra.mxu0 %v1013
      %1170 = vmatpush.msra.mxu0 %v1010
      %1171 = vmatmul.f32.gmra.mxu0 %v1070
      %v1172 = vpop.f32.mrf.mxu0
      %v1173 = vadd.f32 %v1066, %v1172
      %1174 = vdwg.mxu0
      %1175 = vmatpush.msra.mxu0 0.0
      %1176 = vmatpush.msra.mxu0 0.0
      %1177 = vmatpush.msra.mxu0 0.0
      %1178 = vmatpush.msra.mxu0 0.0
      %1179 = vmatpush.msra.mxu0 0.0
      %1180 = vmatpush.msra.mxu0 0.0
      %1181 = vmatpush.msra.mxu0 0.0
      %1182 = vmatpush.msra.mxu0 0.0
      %1183 = vmatpush.msra.mxu0 0.0
      %1184 = vmatpush.msra.mxu0 0.0
      %1185 = vmatpush.msra.mxu0 0.0
      %1186 = vmatpush.msra.mxu0 0.0
      %1187 = vmatpush.msra.mxu0 0.0
      %1188 = vmatpush.msra.mxu0 0.0
      %1189 = vmatpush.msra.mxu0 %v1061
      %1190 = vmatpush.msra.mxu0 %v1058
      %1191 = vmatmul.f32.gmra.mxu0 %v1073
      %v1192 = vpop.f32.mrf.mxu0
      %v1193 = vadd.f32 %v1173, %v1192
      %1194 = vdwg.mxu0
      %v1195 = vmax.f32 %v1113, 0.0
      %v1196 = vmax.f32 %v1153, 0.0
      %v1197 = vmax.f32 %v1193, 0.0
      %v1198 = vmul.f32 %v1195, %v809
      %v1199 = vmul.f32 %v1196, %v810
      %v1200 = vmul.f32 %v1197, %v811
      %1204 = vrot.lane.b32.xlu0 %v1198, 19
      %v1205 = vpop.permute.xlu0 %1204
      %1206 = vrot.lane.b32.xlu0 %v1199, 19
      %v1207 = vpop.permute.xlu0 %1206
      %1208 = vrot.lane.b32.xlu0 %v1200, 19
      %v1209 = vpop.permute.xlu0 %1208
      %v1210 = vsel %vm830, %v1205, %v1207
      %v1211 = vsel %vm830, %v1207, %v1209
      %vm1215 = vcmask 1043608
      %1216 = vst.msk [vmem:[#allocation2 + $0x18] sm:$0xf] %vm1215, %v1205
      %1217 = vst [vmem:[#allocation2 + $0x20] sm:$0xf] %v1210
      %vm1218 = vcmask 396288
      %1219 = vst.msk [vmem:[#allocation2 + $0x28] sm:$0xf] %vm1218, %v1211
      %v1220 = vld [vmem:[#allocation2] sm:$0xff]
      %v1221 = vld [vmem:[#allocation2 + $0x8] sm:$0xff]
      %v1222 = vld [vmem:[#allocation2 + $0x10] sm:$0xff]
      %v1223 = vld [vmem:[#allocation2 + $0x18] sm:$0xf]
      %v1224 = vld [vmem:[#allocation2 + $0x20] sm:$0xf]
      %v1225 = vld [vmem:[#allocation2 + $0x28] sm:$0xf]
      %1226 = vst [vmem:[#allocation3] sm:$0xff] %v1220
      %1227 = vst [vmem:[#allocation3 + $0x8] sm:$0xff] %v1221
      %1228 = vst.msk [vmem:[#allocation3 + $0x10] sm:$0xff] %vm387, %v1222
      %1229 = vst [vmem:[#allocation3 + $0x18] sm:$0xf] %v1223
      %1230 = vst [vmem:[#allocation3 + $0x20] sm:$0xf] %v1224
      %1231 = vst.msk [vmem:[#allocation3 + $0x28] sm:$0xf] %vm446, %v1225
      %v1232 = vld [vmem:[#allocation2] sm:$0xff]
      %v1233 = vld [vmem:[#allocation2 + $0x8] sm:$0xff]
      %v1234 = vld [vmem:[#allocation2 + $0x10] sm:$0xff]
      %v1235 = vld [vmem:[#allocation2 + $0x18] sm:$0xf]
      %v1236 = vld [vmem:[#allocation2 + $0x20] sm:$0xf]
      %v1237 = vld [vmem:[#allocation2 + $0x28] sm:$0xf]
      %1244 = vrot.lane.b32.xlu0 %v1232, 127
      %v1245 = vpop.permute.xlu0 %1244
      %1246 = vrot.lane.b32.xlu0 %v1233, 127
      %v1247 = vpop.permute.xlu0 %1246
      %1248 = vrot.lane.b32.xlu0 %v1234, 127
      %v1249 = vpop.permute.xlu0 %1248
      %1250 = vrot.lane.b32.xlu0 %v1235, 127
      %v1251 = vpop.permute.xlu0 %1250
      %1252 = vrot.lane.b32.xlu0 %v1236, 127
      %v1253 = vpop.permute.xlu0 %1252
      %1254 = vrot.lane.b32.xlu0 %v1237, 127
      %v1255 = vpop.permute.xlu0 %1254
      %v1256 = vsel %vm460, %v1245, %v1247
      %v1257 = vsel %vm460, %v1247, %v1249
      %v1258 = vsel %vm460, %v1251, %v1253
      %v1259 = vsel %vm460, %v1253, %v1255
      %1266 = vst [vmem:[#allocation3 + $0x30] sm:$0xff] %v1256
      %1267 = vst [vmem:[#allocation3 + $0x38] sm:$0xff] %v1257
      %1268 = vst.msk [vmem:[#allocation3 + $0x40] sm:$0xff] %vm387, %v1249
      %1269 = vst [vmem:[#allocation3 + $0x48] sm:$0xf] %v1258
      %1270 = vst [vmem:[#allocation3 + $0x50] sm:$0xf] %v1259
      %1271 = vst.msk [vmem:[#allocation3 + $0x58] sm:$0xf] %vm446, %v1255
      %v1272 = vld [vmem:[#allocation2] sm:$0xff]
      %v1273 = vld [vmem:[#allocation2 + $0x8] sm:$0xff]
      %v1274 = vld [vmem:[#allocation2 + $0x10] sm:$0xff]
      %v1275 = vld [vmem:[#allocation2 + $0x18] sm:$0xf]
      %v1276 = vld [vmem:[#allocation2 + $0x20] sm:$0xf]
      %v1277 = vld [vmem:[#allocation2 + $0x28] sm:$0xf]
      %1284 = vrot.lane.b32.xlu0 %v1272, 126
      %v1285 = vpop.permute.xlu0 %1284
      %1286 = vrot.lane.b32.xlu0 %v1273, 126
      %v1287 = vpop.permute.xlu0 %1286
      %1288 = vrot.lane.b32.xlu0 %v1274, 126
      %v1289 = vpop.permute.xlu0 %1288
      %1290 = vrot.lane.b32.xlu0 %v1275, 126
      %v1291 = vpop.permute.xlu0 %1290
      %1292 = vrot.lane.b32.xlu0 %v1276, 126
      %v1293 = vpop.permute.xlu0 %1292
      %1294 = vrot.lane.b32.xlu0 %v1277, 126
      %v1295 = vpop.permute.xlu0 %1294
      %v1296 = vsel %vm481, %v1285, %v1287
      %v1297 = vsel %vm481, %v1287, %v1289
      %v1298 = vsel %vm481, %v1291, %v1293
      %v1299 = vsel %vm481, %v1293, %v1295
      %1306 = vst [vmem:[#allocation3 + $0x60] sm:$0xff] %v1296
      %1307 = vst [vmem:[#allocation3 + $0x68] sm:$0xff] %v1297
      %1308 = vst.msk [vmem:[#allocation3 + $0x70] sm:$0xff] %vm387, %v1289
      %1309 = vst [vmem:[#allocation3 + $0x78] sm:$0xf] %v1298
      %1310 = vst [vmem:[#allocation3 + $0x80] sm:$0xf] %v1299
      %1311 = vst.msk [vmem:[#allocation3 + $0x88] sm:$0xf] %vm446, %v1295
      %v1312 = vld [vmem:[#allocation2] sm:$0xff]
      %v1313 = vld [vmem:[#allocation2 + $0x8] sm:$0xff]
      %v1314 = vld [vmem:[#allocation2 + $0x10] sm:$0xff]
      %v1315 = vld [vmem:[#allocation2 + $0x18] sm:$0xf]
      %v1316 = vld [vmem:[#allocation2 + $0x20] sm:$0xf]
      %v1317 = vld [vmem:[#allocation2 + $0x28] sm:$0xf]
      %1324 = vrot.lane.b32.xlu0 %v1312, 110
      %v1325 = vpop.permute.xlu0 %1324
      %1326 = vrot.lane.b32.xlu0 %v1313, 110
      %v1327 = vpop.permute.xlu0 %1326
      %1328 = vrot.lane.b32.xlu0 %v1314, 110
      %v1329 = vpop.permute.xlu0 %1328
      %1330 = vrot.lane.b32.xlu0 %v1315, 110
      %v1331 = vpop.permute.xlu0 %1330
      %1332 = vrot.lane.b32.xlu0 %v1316, 110
      %v1333 = vpop.permute.xlu0 %1332
      %1334 = vrot.lane.b32.xlu0 %v1317, 110
      %v1335 = vpop.permute.xlu0 %1334
      %v1336 = vsel %vm502, %v1325, %v1327
      %v1337 = vsel %vm502, %v1327, %v1329
      %v1338 = vsel %vm502, %v1331, %v1333
      %v1339 = vsel %vm502, %v1333, %v1335
      %1346 = vst [vmem:[#allocation3 + $0x90] sm:$0xff] %v1336
      %1347 = vst [vmem:[#allocation3 + $0x98] sm:$0xff] %v1337
      %1348 = vst.msk [vmem:[#allocation3 + $0xa0] sm:$0xff] %vm387, %v1329
      %1349 = vst [vmem:[#allocation3 + $0xa8] sm:$0xf] %v1338
      %1350 = vst [vmem:[#allocation3 + $0xb0] sm:$0xf] %v1339
      %1351 = vst.msk [vmem:[#allocation3 + $0xb8] sm:$0xf] %vm446, %v1335
      %v1352 = vld [vmem:[#allocation2] sm:$0xff]
      %v1353 = vld [vmem:[#allocation2 + $0x8] sm:$0xff]
      %v1354 = vld [vmem:[#allocation2 + $0x10] sm:$0xff]
      %v1355 = vld [vmem:[#allocation2 + $0x18] sm:$0xf]
      %v1356 = vld [vmem:[#allocation2 + $0x20] sm:$0xf]
      %v1357 = vld [vmem:[#allocation2 + $0x28] sm:$0xf]
      %1364 = vrot.lane.b32.xlu0 %v1352, 109
      %v1365 = vpop.permute.xlu0 %1364
      %1366 = vrot.lane.b32.xlu0 %v1353, 109
      %v1367 = vpop.permute.xlu0 %1366
      %1368 = vrot.lane.b32.xlu0 %v1354, 109
      %v1369 = vpop.permute.xlu0 %1368
      %1370 = vrot.lane.b32.xlu0 %v1355, 109
      %v1371 = vpop.permute.xlu0 %1370
      %1372 = vrot.lane.b32.xlu0 %v1356, 109
      %v1373 = vpop.permute.xlu0 %1372
      %1374 = vrot.lane.b32.xlu0 %v1357, 109
      %v1375 = vpop.permute.xlu0 %1374
      %v1376 = vsel %vm523, %v1365, %v1367
      %v1377 = vsel %vm523, %v1367, %v1369
      %v1378 = vsel %vm523, %v1371, %v1373
      %v1379 = vsel %vm523, %v1373, %v1375
      %1386 = vst [vmem:[#allocation3 + $0xc0] sm:$0xff] %v1376
      %1387 = vst [vmem:[#allocation3 + $0xc8] sm:$0xff] %v1377
      %1388 = vst.msk [vmem:[#allocation3 + $0xd0] sm:$0xff] %vm387, %v1369
      %1389 = vst [vmem:[#allocation3 + $0xd8] sm:$0xf] %v1378
      %1390 = vst [vmem:[#allocation3 + $0xe0] sm:$0xf] %v1379
      %1391 = vst.msk [vmem:[#allocation3 + $0xe8] sm:$0xf] %vm446, %v1375
      %v1392 = vld [vmem:[#allocation2] sm:$0xff]
      %v1393 = vld [vmem:[#allocation2 + $0x8] sm:$0xff]
      %v1394 = vld [vmem:[#allocation2 + $0x10] sm:$0xff]
      %v1395 = vld [vmem:[#allocation2 + $0x18] sm:$0xf]
      %v1396 = vld [vmem:[#allocation2 + $0x20] sm:$0xf]
      %v1397 = vld [vmem:[#allocation2 + $0x28] sm:$0xf]
      %1404 = vrot.lane.b32.xlu0 %v1392, 108
      %v1405 = vpop.permute.xlu0 %1404
      %1406 = vrot.lane.b32.xlu0 %v1393, 108
      %v1407 = vpop.permute.xlu0 %1406
      %1408 = vrot.lane.b32.xlu0 %v1394, 108
      %v1409 = vpop.permute.xlu0 %1408
      %1410 = vrot.lane.b32.xlu0 %v1395, 108
      %v1411 = vpop.permute.xlu0 %1410
      %1412 = vrot.lane.b32.xlu0 %v1396, 108
      %v1413 = vpop.permute.xlu0 %1412
      %1414 = vrot.lane.b32.xlu0 %v1397, 108
      %v1415 = vpop.permute.xlu0 %1414
      %v1416 = vsel %vm544, %v1405, %v1407
      %v1417 = vsel %vm544, %v1407, %v1409
      %v1418 = vsel %vm544, %v1411, %v1413
      %v1419 = vsel %vm544, %v1413, %v1415
      %1426 = vst [vmem:[#allocation3 + $0xf0] sm:$0xff] %v1416
      %1427 = vst [vmem:[#allocation3 + $0xf8] sm:$0xff] %v1417
      %1428 = vst.msk [vmem:[#allocation3 + $0x100] sm:$0xff] %vm387, %v1409
      %1429 = vst [vmem:[#allocation3 + $0x108] sm:$0xf] %v1418
      %1430 = vst [vmem:[#allocation3 + $0x110] sm:$0xf] %v1419
      %1431 = vst.msk [vmem:[#allocation3 + $0x118] sm:$0xf] %vm446, %v1415
      %v1432 = vld [vmem:[#allocation2] sm:$0xff]
      %v1433 = vld [vmem:[#allocation2 + $0x8] sm:$0xff]
      %v1434 = vld [vmem:[#allocation2 + $0x10] sm:$0xff]
      %v1435 = vld [vmem:[#allocation2 + $0x18] sm:$0xf]
      %v1436 = vld [vmem:[#allocation2 + $0x20] sm:$0xf]
      %v1437 = vld [vmem:[#allocation2 + $0x28] sm:$0xf]
      %1444 = vrot.lane.b32.xlu0 %v1432, 92
      %v1445 = vpop.permute.xlu0 %1444
      %1446 = vrot.lane.b32.xlu0 %v1433, 92
      %v1447 = vpop.permute.xlu0 %1446
      %1448 = vrot.lane.b32.xlu0 %v1434, 92
      %v1449 = vpop.permute.xlu0 %1448
      %1450 = vrot.lane.b32.xlu0 %v1435, 92
      %v1451 = vpop.permute.xlu0 %1450
      %1452 = vrot.lane.b32.xlu0 %v1436, 92
      %v1453 = vpop.permute.xlu0 %1452
      %1454 = vrot.lane.b32.xlu0 %v1437, 92
      %v1455 = vpop.permute.xlu0 %1454
      %v1456 = vsel %vm565, %v1445, %v1447
      %v1457 = vsel %vm565, %v1447, %v1449
      %v1458 = vsel %vm565, %v1451, %v1453
      %v1459 = vsel %vm565, %v1453, %v1455
      %1466 = vst [vmem:[#allocation3 + $0x120] sm:$0xff] %v1456
      %1467 = vst [vmem:[#allocation3 + $0x128] sm:$0xff] %v1457
      %1468 = vst.msk [vmem:[#allocation3 + $0x130] sm:$0xff] %vm387, %v1449
      %1469 = vst [vmem:[#allocation3 + $0x138] sm:$0xf] %v1458
      %1470 = vst [vmem:[#allocation3 + $0x140] sm:$0xf] %v1459
      %1471 = vst.msk [vmem:[#allocation3 + $0x148] sm:$0xf] %vm446, %v1455
      %v1472 = vld [vmem:[#allocation2] sm:$0xff]
      %v1473 = vld [vmem:[#allocation2 + $0x8] sm:$0xff]
      %v1474 = vld [vmem:[#allocation2 + $0x10] sm:$0xff]
      %v1475 = vld [vmem:[#allocation2 + $0x18] sm:$0xf]
      %v1476 = vld [vmem:[#allocation2 + $0x20] sm:$0xf]
      %v1477 = vld [vmem:[#allocation2 + $0x28] sm:$0xf]
      %1484 = vrot.lane.b32.xlu0 %v1472, 91
      %v1485 = vpop.permute.xlu0 %1484
      %1486 = vrot.lane.b32.xlu0 %v1473, 91
      %v1487 = vpop.permute.xlu0 %1486
      %1488 = vrot.lane.b32.xlu0 %v1474, 91
      %v1489 = vpop.permute.xlu0 %1488
      %1490 = vrot.lane.b32.xlu0 %v1475, 91
      %v1491 = vpop.permute.xlu0 %1490
      %1492 = vrot.lane.b32.xlu0 %v1476, 91
      %v1493 = vpop.permute.xlu0 %1492
      %1494 = vrot.lane.b32.xlu0 %v1477, 91
      %v1495 = vpop.permute.xlu0 %1494
      %v1496 = vsel %vm586, %v1485, %v1487
      %v1497 = vsel %vm586, %v1487, %v1489
      %v1498 = vsel %vm586, %v1491, %v1493
      %v1499 = vsel %vm586, %v1493, %v1495
      %1506 = vst [vmem:[#allocation3 + $0x150] sm:$0xff] %v1496
      %1507 = vst [vmem:[#allocation3 + $0x158] sm:$0xff] %v1497
      %1508 = vst.msk [vmem:[#allocation3 + $0x160] sm:$0xff] %vm387, %v1489
      %1509 = vst [vmem:[#allocation3 + $0x168] sm:$0xf] %v1498
      %1510 = vst [vmem:[#allocation3 + $0x170] sm:$0xf] %v1499
      %1511 = vst.msk [vmem:[#allocation3 + $0x178] sm:$0xf] %vm446, %v1495
      %v1512 = vld [vmem:[#allocation2] sm:$0xff]
      %v1513 = vld [vmem:[#allocation2 + $0x8] sm:$0xff]
      %v1514 = vld [vmem:[#allocation2 + $0x10] sm:$0xff]
      %v1515 = vld [vmem:[#allocation2 + $0x18] sm:$0xf]
      %v1516 = vld [vmem:[#allocation2 + $0x20] sm:$0xf]
      %v1517 = vld [vmem:[#allocation2 + $0x28] sm:$0xf]
      %1524 = vrot.lane.b32.xlu0 %v1512, 90
      %v1525 = vpop.permute.xlu0 %1524
      %1526 = vrot.lane.b32.xlu0 %v1513, 90
      %v1527 = vpop.permute.xlu0 %1526
      %1528 = vrot.lane.b32.xlu0 %v1514, 90
      %v1529 = vpop.permute.xlu0 %1528
      %1530 = vrot.lane.b32.xlu0 %v1515, 90
      %v1531 = vpop.permute.xlu0 %1530
      %1532 = vrot.lane.b32.xlu0 %v1516, 90
      %v1533 = vpop.permute.xlu0 %1532
      %1534 = vrot.lane.b32.xlu0 %v1517, 90
      %v1535 = vpop.permute.xlu0 %1534
      %v1536 = vsel %vm607, %v1525, %v1527
      %v1537 = vsel %vm607, %v1527, %v1529
      %v1538 = vsel %vm607, %v1531, %v1533
      %v1539 = vsel %vm607, %v1533, %v1535
      %1546 = vst [vmem:[#allocation3 + $0x180] sm:$0xff] %v1536
      %1547 = vst [vmem:[#allocation3 + $0x188] sm:$0xff] %v1537
      %1548 = vst.msk [vmem:[#allocation3 + $0x190] sm:$0xff] %vm387, %v1529
      %1549 = vst [vmem:[#allocation3 + $0x198] sm:$0xf] %v1538
      %1550 = vst [vmem:[#allocation3 + $0x1a0] sm:$0xf] %v1539
      %1551 = vst.msk [vmem:[#allocation3 + $0x1a8] sm:$0xf] %vm446, %v1535
      %v1552 = vld [vmem:[%s6] sm:$0xff]
      %v1553 = vld [vmem:[#allocation3] sm:$0xff]
      %v1554 = vld [vmem:[#allocation3 + $0x8] sm:$0xff]
      %v1555 = vld [vmem:[#allocation3 + $0x10] sm:$0xff]
      %v1556 = vld [vmem:[#allocation3 + $0x18] sm:$0xff]
      %v1557 = vld [vmem:[#allocation3 + $0x20] sm:$0xff]
      %v1558 = vld [vmem:[#allocation3 + $0x28] sm:$0xff]
      %v1559 = vld [vmem:[#allocation3 + $0x30] sm:$0xff]
      %v1560 = vld [vmem:[#allocation3 + $0x38] sm:$0xff]
      %v1561 = vld [vmem:[#allocation3 + $0x40] sm:$0xff]
      %v1562 = vld [vmem:[#allocation3 + $0x48] sm:$0xff]
      %v1563 = vld [vmem:[#allocation3 + $0x50] sm:$0xff]
      %v1564 = vld [vmem:[#allocation3 + $0x58] sm:$0xff]
      %v1565 = vld [vmem:[#allocation3 + $0x60] sm:$0xff]
      %v1566 = vld [vmem:[#allocation3 + $0x68] sm:$0xff]
      %v1567 = vld [vmem:[#allocation3 + $0x70] sm:$0xff]
      %v1568 = vld [vmem:[#allocation3 + $0x78] sm:$0xff]
      %v1569 = vld [vmem:[#allocation3 + $0x80] sm:$0xff]
      %v1570 = vld [vmem:[#allocation3 + $0x88] sm:$0xff]
      %v1571 = vld [vmem:[#allocation3 + $0x90] sm:$0xff]
      %v1572 = vld [vmem:[#allocation3 + $0x98] sm:$0xff]
      %v1573 = vld [vmem:[#allocation3 + $0xa0] sm:$0xff]
      %v1574 = vld [vmem:[#allocation3 + $0xa8] sm:$0xff]
      %v1575 = vld [vmem:[#allocation3 + $0xb0] sm:$0xff]
      %v1576 = vld [vmem:[#allocation3 + $0xb8] sm:$0xff]
      %v1577 = vld [vmem:[#allocation3 + $0xc0] sm:$0xff]
      %v1578 = vld [vmem:[#allocation3 + $0xc8] sm:$0xff]
      %v1579 = vld [vmem:[#allocation3 + $0xd0] sm:$0xff]
      %v1580 = vld [vmem:[#allocation3 + $0xd8] sm:$0xff]
      %v1581 = vld [vmem:[#allocation3 + $0xe0] sm:$0xff]
      %v1582 = vld [vmem:[#allocation3 + $0xe8] sm:$0xff]
      %v1583 = vld [vmem:[#allocation3 + $0xf0] sm:$0xff]
      %v1584 = vld [vmem:[#allocation3 + $0xf8] sm:$0xff]
      %v1585 = vld [vmem:[#allocation3 + $0x100] sm:$0xff]
      %v1586 = vld [vmem:[#allocation3 + $0x108] sm:$0xff]
      %v1587 = vld [vmem:[#allocation3 + $0x110] sm:$0xff]
      %v1588 = vld [vmem:[#allocation3 + $0x118] sm:$0xff]
      %v1589 = vld [vmem:[#allocation3 + $0x120] sm:$0xff]
      %v1590 = vld [vmem:[#allocation3 + $0x128] sm:$0xff]
      %v1591 = vld [vmem:[#allocation3 + $0x130] sm:$0xff]
      %v1592 = vld [vmem:[#allocation3 + $0x138] sm:$0xff]
      %v1593 = vld [vmem:[#allocation3 + $0x140] sm:$0xff]
      %v1594 = vld [vmem:[#allocation3 + $0x148] sm:$0xff]
      %v1595 = vld [vmem:[#allocation3 + $0x150] sm:$0xff]
      %v1596 = vld [vmem:[#allocation3 + $0x158] sm:$0xff]
      %v1597 = vld [vmem:[#allocation3 + $0x160] sm:$0xff]
      %v1598 = vld [vmem:[#allocation3 + $0x168] sm:$0xff]
      %v1599 = vld [vmem:[#allocation3 + $0x170] sm:$0xff]
      %v1600 = vld [vmem:[#allocation3 + $0x178] sm:$0xff]
      %v1601 = vld [vmem:[#allocation3 + $0x180] sm:$0xff]
      %v1602 = vld [vmem:[#allocation3 + $0x188] sm:$0xff]
      %v1603 = vld [vmem:[#allocation3 + $0x190] sm:$0xff]
      %v1604 = vld [vmem:[#allocation3 + $0x198] sm:$0xff]
      %v1605 = vld [vmem:[#allocation3 + $0x1a0] sm:$0xff]
      %v1606 = vld [vmem:[#allocation3 + $0x1a8] sm:$0xff]
      %v1607 = vld [vmem:[%s7] sm:$0xf]
      %1609 = vset.pattern.permute.xlu0 0
      %1610 = vperm.xlu0 %1609, %v1607
      %v1611 = vpop.permute.xlu0 %1610
      %1614 = vst [vmem:[#allocation1] ss:$2 sm:$0xff] %v1552
      %v1615 = vld.sshfl [vmem:[#allocation1] sm:$0xff pattern:$0x75316420]
      %v1616 = vld.sshfl [vmem:[#allocation1 + $0x8] sm:$0xff pattern:$0x75316420]
      %v1618 = vsel %vm682, %v1616, 0
      %1620 = vmatpush.msra.mxu0 %v1598
      %1621 = vmatpush.msra.mxu0 %v1595
      %1622 = vmatpush.msra.mxu0 %v1592
      %1623 = vmatpush.msra.mxu0 %v1589
      %1624 = vmatpush.msra.mxu0 %v1586
      %1625 = vmatpush.msra.mxu0 %v1583
      %1626 = vmatpush.msra.mxu0 %v1580
      %1627 = vmatpush.msra.mxu0 %v1577
      %1628 = vmatpush.msra.mxu0 %v1574
      %1629 = vmatpush.msra.mxu0 %v1571
      %1630 = vmatpush.msra.mxu0 %v1568
      %1631 = vmatpush.msra.mxu0 %v1565
      %1632 = vmatpush.msra.mxu0 %v1562
      %1633 = vmatpush.msra.mxu0 %v1559
      %1634 = vmatpush.msra.mxu0 %v1556
      %1635 = vmatpush.msra.mxu0 %v1553
      %1636 = vmatmul.f32.gmra.mxu0 %v1615
      %v1637 = vpop.f32.mrf.mxu0
      %v1638 = vadd.f32 %v1611, %v1637
      %1639 = vdwg.mxu0
      %1640 = vmatpush.msra.mxu0 0.0
      %1641 = vmatpush.msra.mxu0 0.0
      %1642 = vmatpush.msra.mxu0 0.0
      %1643 = vmatpush.msra.mxu0 0.0
      %1644 = vmatpush.msra.mxu0 0.0
      %1645 = vmatpush.msra.mxu0 0.0
      %1646 = vmatpush.msra.mxu0 0.0
      %1647 = vmatpush.msra.mxu0 0.0
      %1648 = vmatpush.msra.mxu0 0.0
      %1649 = vmatpush.msra.mxu0 0.0
      %1650 = vmatpush.msra.mxu0 0.0
      %1651 = vmatpush.msra.mxu0 0.0
      %1652 = vmatpush.msra.mxu0 0.0
      %1653 = vmatpush.msra.mxu0 0.0
      %1654 = vmatpush.msra.mxu0 %v1604
      %1655 = vmatpush.msra.mxu0 %v1601
      %1656 = vmatmul.f32.gmra.mxu0 %v1618
      %v1657 = vpop.f32.mrf.mxu0
      %v1658 = vadd.f32 %v1638, %v1657
      %1659 = vdwg.mxu0
      %1660 = vmatpush.msra.mxu0 %v1599
      %1661 = vmatpush.msra.mxu0 %v1596
      %1662 = vmatpush.msra.mxu0 %v1593
      %1663 = vmatpush.msra.mxu0 %v1590
      %1664 = vmatpush.msra.mxu0 %v1587
      %1665 = vmatpush.msra.mxu0 %v1584
      %1666 = vmatpush.msra.mxu0 %v1581
      %1667 = vmatpush.msra.mxu0 %v1578
      %1668 = vmatpush.msra.mxu0 %v1575
      %1669 = vmatpush.msra.mxu0 %v1572
      %1670 = vmatpush.msra.mxu0 %v1569
      %1671 = vmatpush.msra.mxu0 %v1566
      %1672 = vmatpush.msra.mxu0 %v1563
      %1673 = vmatpush.msra.mxu0 %v1560
      %1674 = vmatpush.msra.mxu0 %v1557
      %1675 = vmatpush.msra.mxu0 %v1554
      %1676 = vmatmul.f32.gmra.mxu0 %v1615
      %v1677 = vpop.f32.mrf.mxu0
      %v1678 = vadd.f32 %v1611, %v1677
      %1679 = vdwg.mxu0
      %1680 = vmatpush.msra.mxu0 0.0
      %1681 = vmatpush.msra.mxu0 0.0
      %1682 = vmatpush.msra.mxu0 0.0
      %1683 = vmatpush.msra.mxu0 0.0
      %1684 = vmatpush.msra.mxu0 0.0
      %1685 = vmatpush.msra.mxu0 0.0
      %1686 = vmatpush.msra.mxu0 0.0
      %1687 = vmatpush.msra.mxu0 0.0
      %1688 = vmatpush.msra.mxu0 0.0
      %1689 = vmatpush.msra.mxu0 0.0
      %1690 = vmatpush.msra.mxu0 0.0
      %1691 = vmatpush.msra.mxu0 0.0
      %1692 = vmatpush.msra.mxu0 0.0
      %1693 = vmatpush.msra.mxu0 0.0
      %1694 = vmatpush.msra.mxu0 %v1605
      %1695 = vmatpush.msra.mxu0 %v1602
      %1696 = vmatmul.f32.gmra.mxu0 %v1618
      %v1697 = vpop.f32.mrf.mxu0
      %v1698 = vadd.f32 %v1678, %v1697
      %1699 = vdwg.mxu0
      %1700 = vmatpush.msra.mxu0 %v1600
      %1701 = vmatpush.msra.mxu0 %v1597
      %1702 = vmatpush.msra.mxu0 %v1594
      %1703 = vmatpush.msra.mxu0 %v1591
      %1704 = vmatpush.msra.mxu0 %v1588
      %1705 = vmatpush.msra.mxu0 %v1585
      %1706 = vmatpush.msra.mxu0 %v1582
      %1707 = vmatpush.msra.mxu0 %v1579
      %1708 = vmatpush.msra.mxu0 %v1576
      %1709 = vmatpush.msra.mxu0 %v1573
      %1710 = vmatpush.msra.mxu0 %v1570
      %1711 = vmatpush.msra.mxu0 %v1567
      %1712 = vmatpush.msra.mxu0 %v1564
      %1713 = vmatpush.msra.mxu0 %v1561
      %1714 = vmatpush.msra.mxu0 %v1558
      %1715 = vmatpush.msra.mxu0 %v1555
      %1716 = vmatmul.f32.gmra.mxu0 %v1615
      %v1717 = vpop.f32.mrf.mxu0
      %v1718 = vadd.f32 %v1611, %v1717
      %1719 = vdwg.mxu0
      %1720 = vmatpush.msra.mxu0 0.0
      %1721 = vmatpush.msra.mxu0 0.0
      %1722 = vmatpush.msra.mxu0 0.0
      %1723 = vmatpush.msra.mxu0 0.0
      %1724 = vmatpush.msra.mxu0 0.0
      %1725 = vmatpush.msra.mxu0 0.0
      %1726 = vmatpush.msra.mxu0 0.0
      %1727 = vmatpush.msra.mxu0 0.0
      %1728 = vmatpush.msra.mxu0 0.0
      %1729 = vmatpush.msra.mxu0 0.0
      %1730 = vmatpush.msra.mxu0 0.0
      %1731 = vmatpush.msra.mxu0 0.0
      %1732 = vmatpush.msra.mxu0 0.0
      %1733 = vmatpush.msra.mxu0 0.0
      %1734 = vmatpush.msra.mxu0 %v1606
      %1735 = vmatpush.msra.mxu0 %v1603
      %1736 = vmatmul.f32.gmra.mxu0 %v1618
      %v1737 = vpop.f32.mrf.mxu0
      %v1738 = vadd.f32 %v1718, %v1737
      %1739 = vdwg.mxu0
      %v1740 = vmax.f32 %v1658, 0.0
      %v1741 = vmax.f32 %v1698, 0.0
      %v1742 = vmax.f32 %v1738, 0.0
      %v1743 = vmul.f32 %v1740, %v809
      %v1744 = vmul.f32 %v1741, %v810
      %v1745 = vmul.f32 %v1742, %v811
      %v1749 = vrot.slane %v1743, 4
      %v1750 = vrot.slane %v1744, 4
      %v1751 = vrot.slane %v1745, 4
      %1752 = vrot.lane.b32.xlu0 %v1749, 19
      %v1753 = vpop.permute.xlu0 %1752
      %1754 = vrot.lane.b32.xlu0 %v1750, 19
      %v1755 = vpop.permute.xlu0 %1754
      %1756 = vrot.lane.b32.xlu0 %v1751, 19
      %v1757 = vpop.permute.xlu0 %1756
      %v1758 = vsel %vm830, %v1753, %v1755
      %v1759 = vsel %vm830, %v1755, %v1757
      %1763 = vst.msk [vmem:[#allocation2 + $0x18] sm:$0xf0] %vm836, %v1753
      %1764 = vst [vmem:[#allocation2 + $0x20] sm:$0xf0] %v1758
      %1765 = vst.msk [vmem:[#allocation2 + $0x28] sm:$0xf0] %vm839, %v1759
      %v1766 = vld [vmem:[#allocation2] sm:$0xff]
      %v1767 = vld [vmem:[#allocation2 + $0x8] sm:$0xff]
      %v1768 = vld [vmem:[#allocation2 + $0x10] sm:$0xff]
      %v1769 = vld [vmem:[#allocation2 + $0x18] sm:$0xff]
      %v1770 = vld [vmem:[#allocation2 + $0x20] sm:$0xff]
      %v1771 = vld [vmem:[#allocation2 + $0x28] sm:$0xff]
      %v1772 = vld [vmem:[#allocation2] sm:$0xf]
      %v1773 = vld [vmem:[#allocation2 + $0x8] sm:$0xf]
      %v1774 = vld [vmem:[#allocation2 + $0x10] sm:$0xf]
      %v1775 = vld [vmem:[%s8] sm:$0xf]
      %v1776 = vld [vmem:[%s9] sm:$0xf]
      %1778 = vset.pattern.permute.xlu0 0
      %1779 = vperm.xlu0 %1778, %v1776
      %v1780 = vpop.permute.xlu0 %1779
      %1788 = vrot.lane.b32.xlu0 %v1766, 109
      %v1789 = vpop.permute.xlu0 %1788
      %1790 = vrot.lane.b32.xlu0 %v1767, 109
      %v1791 = vpop.permute.xlu0 %1790
      %1792 = vrot.lane.b32.xlu0 %v1768, 109
      %v1793 = vpop.permute.xlu0 %1792
      %1794 = vrot.lane.b32.xlu0 %v1769, 109
      %v1795 = vpop.permute.xlu0 %1794
      %1796 = vrot.lane.b32.xlu0 %v1770, 109
      %v1797 = vpop.permute.xlu0 %1796
      %1798 = vrot.lane.b32.xlu0 %v1771, 109
      %v1799 = vpop.permute.xlu0 %1798
      %v1800 = vsel %vm523, %v1789, %v1791
      %v1801 = vsel %vm523, %v1791, %v1793
      %v1802 = vsel %vm523, %v1795, %v1797
      %v1803 = vsel %vm523, %v1797, %v1799
      %v1811 = vsel %vm682, %v1775, 0
      %1813 = vmatpush.msra.mxu0 0.0
      %1814 = vmatpush.msra.mxu0 0.0
      %1815 = vmatpush.msra.mxu0 0.0
      %1816 = vmatpush.msra.mxu0 0.0
      %1817 = vmatpush.msra.mxu0 0.0
      %1818 = vmatpush.msra.mxu0 0.0
      %1819 = vmatpush.msra.mxu0 0.0
      %1820 = vmatpush.msra.mxu0 0.0
      %1821 = vmatpush.msra.mxu0 0.0
      %1822 = vmatpush.msra.mxu0 0.0
      %1823 = vmatpush.msra.mxu0 0.0
      %1824 = vmatpush.msra.mxu0 0.0
      %1825 = vmatpush.msra.mxu0 0.0
      %1826 = vmatpush.msra.mxu0 0.0
      %1827 = vmatpush.msra.mxu0 %v1802
      %1828 = vmatpush.msra.mxu0 %v1800
      %1829 = vmatmul.f32.gmra.mxu0 %v1811
      %v1830 = vpop.f32.mrf.mxu0
      %v1831 = vadd.f32 %v1780, %v1830
      %1832 = vdwg.mxu0
      %1833 = vmatpush.msra.mxu0 0.0
      %1834 = vmatpush.msra.mxu0 0.0
      %1835 = vmatpush.msra.mxu0 0.0
      %1836 = vmatpush.msra.mxu0 0.0
      %1837 = vmatpush.msra.mxu0 0.0
      %1838 = vmatpush.msra.mxu0 0.0
      %1839 = vmatpush.msra.mxu0 0.0
      %1840 = vmatpush.msra.mxu0 0.0
      %1841 = vmatpush.msra.mxu0 0.0
      %1842 = vmatpush.msra.mxu0 0.0
      %1843 = vmatpush.msra.mxu0 0.0
      %1844 = vmatpush.msra.mxu0 0.0
      %1845 = vmatpush.msra.mxu0 0.0
      %1846 = vmatpush.msra.mxu0 0.0
      %1847 = vmatpush.msra.mxu0 %v1803
      %1848 = vmatpush.msra.mxu0 %v1801
      %1849 = vmatmul.f32.gmra.mxu0 %v1811
      %v1850 = vpop.f32.mrf.mxu0
      %v1851 = vadd.f32 %v1780, %v1850
      %1852 = vdwg.mxu0
      %1853 = vmatpush.msra.mxu0 0.0
      %1854 = vmatpush.msra.mxu0 0.0
      %1855 = vmatpush.msra.mxu0 0.0
      %1856 = vmatpush.msra.mxu0 0.0
      %1857 = vmatpush.msra.mxu0 0.0
      %1858 = vmatpush.msra.mxu0 0.0
      %1859 = vmatpush.msra.mxu0 0.0
      %1860 = vmatpush.msra.mxu0 0.0
      %1861 = vmatpush.msra.mxu0 0.0
      %1862 = vmatpush.msra.mxu0 0.0
      %1863 = vmatpush.msra.mxu0 0.0
      %1864 = vmatpush.msra.mxu0 0.0
      %1865 = vmatpush.msra.mxu0 0.0
      %1866 = vmatpush.msra.mxu0 0.0
      %1867 = vmatpush.msra.mxu0 %v1799
      %1868 = vmatpush.msra.mxu0 %v1793
      %1869 = vmatmul.f32.gmra.mxu0 %v1811
      %v1870 = vpop.f32.mrf.mxu0
      %v1871 = vadd.f32 %v1780, %v1870
      %1872 = vdwg.mxu0
      %1876 = vrot.lane.b32.xlu0 %v1772, 109
      %v1877 = vpop.permute.xlu0 %1876
      %1878 = vrot.lane.b32.xlu0 %v1773, 109
      %v1879 = vpop.permute.xlu0 %1878
      %1880 = vrot.lane.b32.xlu0 %v1774, 109
      %v1881 = vpop.permute.xlu0 %1880
      %v1882 = vsel %vm523, %v1877, %v1879
      %v1883 = vsel %vm523, %v1879, %v1881
      %v1887 = vadd.f32 %v1831, %v1882
      %v1888 = vadd.f32 %v1851, %v1883
      %v1889 = vadd.f32 %v1871, %v1881
      %v1892 = vrot.slane %v1888, 4
      %vm1893 = vcmask 1043456
      %v1894 = vsel %vm1893, %v1887, %v1892
      %1896 = vst [vmem:[%s359] sm:$0xff] %v1894
      %vm1897 = vcmask 257024
      %1898 = vst.msk [vmem:[%s359 + $0x8] sm:$0xf] %vm1897, %v1889
      %p1899 = scmp.lt.s32.totalorder %s21, 1
      %s1900 = scalar_select %p1899, %s21, 1
      %s1901 = smul.addr %s1900, 3
      %s1902 = smul.addr %s1901, 4
      %s1903 = scalar_lea.vmem %s10, %s1902
      // Predicated region
      $region61: #{rdb_forward_pallas.1} parent=59 // pred_check
        %p1904 = pneg %p254
      $region62: #{rdb_forward_pallas.1} parent=59 // pred_check_branch
        %1906 = sbr.rel (%p1904) target = $region64
      $region63: #{rdb_forward_pallas.1} parent=59 // pred_region
        _
      $region64: #{rdb_forward_pallas.1} parent=59 // pred_fallthru
        _
    $region60: #{rdb_forward_pallas.1} parent=5 // pred_fallthru
      _
    %p1907 = scmp.le.s32.totalorder 2, %s16
    // Predicated region
    $region65: #{rdb_forward_pallas.1} parent=5 // pred_check
      %p1908 = pneg %p1907
    $region66: #{rdb_forward_pallas.1} parent=5 // pred_check_branch
      %1910 = sbr.rel (%p1908) target = $region68
    $region67: #{rdb_forward_pallas.1} parent=5 // pred_region
      %s1911 = ssub.s32 %s16, 2
      // Predicated region
      $region69: #{rdb_forward_pallas.1} parent=67 // pred_check
        %p1912 = pneg %p260
      $region70: #{rdb_forward_pallas.1} parent=67 // pred_check_branch
        %1914 = sbr.rel (%p1912) target = $region72
      $region71: #{rdb_forward_pallas.1} parent=67 // pred_region
        %p1915 = scmp.lt.s32.totalorder %s22, 1
        %s1916 = scalar_select %p1915, %s22, 1
        %s1917 = smul.addr %s1916, 3
        %s1918 = smul.addr %s1917, 4
        %s1919 = scalar_lea.vmem %s10, %s1918
      $region72: #{rdb_forward_pallas.1} parent=67 // pred_fallthru
        _
    $region68: #{rdb_forward_pallas.1} parent=5 // pred_fallthru
      _
  $region6: #{rdb_forward_pallas.1} parent=0 // loop_footer
    %s20 = sadd.s32 1, %s16
  $region7: #{rdb_forward_pallas.1} parent=0 // loop_footer_branch
    %15 = sbr.rel target = $region3
  $region8: #{rdb_forward_pallas.1} parent=0 // loop_exit
    _

</llo_original>
